<compile_context>
chip_gen: v7x
topology: tpu7x:2x2x1
jax: 0.10.0
libtpu: 0.0.40
codegen_flags: <defaults>
</compile_context>

<pallas_src>
import jax
import jax.numpy as jnp
from jax import lax
from jax.experimental import pallas as pl
from jax.experimental.pallas import tpu as pltpu


def _round_up(x, m):
    return ((x + m - 1) // m) * m


def _lane_pad(w):
    """Halo width (lanes) on each side of the flattened row buffer: >= W+1,
    rounded to 128 so the central activation store stays lane-aligned."""
    return _round_up(w + 1, 128)


def _vmem_limit_bytes():
    """Per-generation scoped-VMEM budget: ~3/4 of physical VMEM (~96 MiB on
    v5e/v6e's 128 MiB, ~48 MiB on v7x's 64 MiB), with a safe fallback."""
    try:
        cap = int(pltpu.get_tpu_info().vmem_capacity_bytes)
    except Exception:
        cap = 128 * 1024 * 1024
    return int(min((cap * 3) // 4, 100 * 1024 * 1024))


def _make_preact_kernel(H, W, HW, LPAD, Cout, Cout_p, identity_shortcut,
                        conv_dtype):
    def kernel(x_ref, w1_ref, w2_ref, s1_ref, b1_ref, s2_ref, b2_ref,
               o_ref, pad1_ref, pad2_ref, p1_ref, p2_ref):
        # Per-tap boundary-validity masks (row AND column).  With these, the
        # pad-buffer halo never needs zeroing: lanes that would read the halo
        # (or wrap across a row) are selected away in f32 before the bf16 cast.
        pos = lax.broadcasted_iota(jnp.int32, (1, HW), 1)
        col = pos % W
        row_ok = {0: pos >= W, 1: None, 2: pos < (H - 1) * W}
        col_ok = {0: col >= 1, 1: None, 2: col <= W - 2}
        masks = {}
        for dy in range(3):
            for dx in range(3):
                ms = [m for m in (row_ok[dy], col_ok[dx]) if m is not None]
                if not ms:
                    masks[(dy, dx)] = None
                elif len(ms) == 1:
                    masks[(dy, dx)] = ms[0]
                else:
                    masks[(dy, dx)] = jnp.logical_and(ms[0], ms[1])

        def im2col(y, pad_ref, p_ref):
            """y: (C, HW) f32 activations (C a multiple of the bf16 sublane
            tile) -> p_ref[:9*C]: bf16 im2col matrix for a 3x3/stride-1/pad-1
            conv (tap-major contraction axis, channel inner)."""
            c = y.shape[0]
            # Single lane-aligned store of the activations; halo lanes are
            # never consumed (masked), so they are never written.
            pad_ref[:, LPAD:LPAD + HW] = y
            for dy in range(3):
                for dx in range(3):
                    k = dy * 3 + dx
                    s = LPAD - (W + 1) + dy * W + dx   # flat tap offset
                    patch = pad_ref[:, s:s + HW]       # lane-offset slice read
                    m = masks[(dy, dx)]
                    if m is not None:
                        patch = jnp.where(m, patch, 0.0)   # f32 masking (VPU)
                    # Full-tile, sublane-aligned bf16 store (c % 16 == 0).
                    p_ref[k * c:(k + 1) * c, :] = patch.astype(conv_dtype)

        x = x_ref[0]                                   # (Cin_p, HW) f32

        # ---- BN1 (eval-mode, folded) + ReLU; padded channels stay zero. ----
        y = jnp.maximum(x * s1_ref[...] + b1_ref[...], 0.0)

        # ---- conv1: one fused im2col matmul (bf16 MXU, f32 accumulation). ---
        im2col(y, pad1_ref, p1_ref)
        z = jnp.dot(w1_ref[...], p1_ref[...],
                    preferred_element_type=jnp.float32)    # (Cout_p, HW)

        # ---- BN2 (eval-mode, folded) + ReLU; padded channels stay zero. -----
        z = jnp.maximum(z * s2_ref[...] + b2_ref[...], 0.0)

        # ---- conv2 (+ fused 1x1 projection shortcut) as one matmul. ---------
        im2col(z, pad2_ref, p2_ref)
        if not identity_shortcut:
            # Raw input x fills the trailing Cin_p rows of the im2col matrix;
            # the matching trailing columns of w2_ref hold wsc^T.
            p2_ref[9 * Cout_p:, :] = x.astype(conv_dtype)
        out = jnp.dot(w2_ref[...], p2_ref[...],
                      preferred_element_type=jnp.float32)  # (Cout, HW)

        if identity_shortcut:
            out = out + x[:Cout, :]                    # f32 identity shortcut

        # Lane-dense store: (Cout, HW) with HW a multiple of 128.
        o_ref[0] = out.astype(o_ref.dtype)

    return kernel


def preact_block_forward(x_nchw, params, *, eps=1e-5, conv_dtype=jnp.bfloat16):
    """NCHW in / NCHW out.  Kernel runs on (C, H*W) slabs (spatial on lanes).
    Stride=1 only; BatchNorm in eval mode (running stats folded)."""
    x = x_nchw.astype(jnp.float32)
    N, Cin, H, W = x.shape
    HW = H * W
    LPAD = _lane_pad(W)

    w1 = params["w1"]                        # (3, 3, Cin, Cout)  HWIO
    w2 = params["w2"]                        # (3, 3, Cout, Cout) HWIO
    Cout = w1.shape[-1]

    # Sublane tile of the im2col dtype: 16 rows for bf16, 8 for f32.
    sub = 32 // jnp.dtype(conv_dtype).itemsize
    Cin_p = _round_up(Cin, sub)
    Cout_p = _round_up(Cout, sub)

    identity_shortcut = "wsc" not in params

    # NCHW -> (N, C, H*W) is a pure reshape; zero-pad channels once so every
    # in-kernel tap store is full-tile aligned and zero-propagating.
    x_flat = x.reshape(N, Cin, HW)
    x_flat = jnp.pad(x_flat, ((0, 0), (0, Cin_p - Cin), (0, 0)))

    # Fold eval-mode BatchNorm into per-channel scale/shift, padded with zeros
    # so padded channels stay exactly zero through BN + ReLU.
    def fold(g, b, m, v, cp):
        s = (g * lax.rsqrt(v + eps)).astype(jnp.float32)
        sh = (b - m * s).astype(jnp.float32)
        s = jnp.pad(s, (0, cp - s.shape[0])).reshape(cp, 1)
        sh = jnp.pad(sh, (0, cp - sh.shape[0])).reshape(cp, 1)
        return s, sh

    s1, b1 = fold(params["bn1_gamma"], params["bn1_beta"],
                  params["bn1_mean"], params["bn1_var"], Cin_p)
    s2, b2 = fold(params["bn2_gamma"], params["bn2_beta"],
                  params["bn2_mean"], params["bn2_var"], Cout_p)

    # im2col weight matrices (tap-major K, channel-padded, bf16 for the MXU).
    # conv1's output M is padded to Cout_p (zero rows) so conv2's im2col tap
    # stores are full-tile aligned too.
    w1p = jnp.pad(w1, ((0, 0), (0, 0), (0, Cin_p - Cin), (0, Cout_p - Cout)))
    w1m = jnp.transpose(w1p.reshape(9 * Cin_p, Cout_p)).astype(conv_dtype)

    w2p = jnp.pad(w2, ((0, 0), (0, 0), (0, Cout_p - Cout), (0, 0)))
    w2m = jnp.transpose(w2p.reshape(9 * Cout_p, Cout))          # (Cout, 9*Cout_p)
    if not identity_shortcut:
        # Fuse the 1x1 projection shortcut into conv2's matmul.
        wsc = jnp.pad(params["wsc"], ((0, Cin_p - Cin), (0, 0)))  # (Cin_p, Cout)
        w2m = jnp.concatenate([w2m, jnp.transpose(wsc)], axis=1)
    w2m = w2m.astype(conv_dtype)
    K2 = w2m.shape[1]
    p2_rows = 9 * Cout_p + (0 if identity_shortcut else Cin_p)

    kernel = _make_preact_kernel(H, W, HW, LPAD, Cout, Cout_p,
                                 identity_shortcut, conv_dtype)

    out_flat = pl.pallas_call(
        kernel,
        out_shape=jax.ShapeDtypeStruct((N, Cout, HW), jnp.float32),
        grid_spec=pltpu.PrefetchScalarGridSpec(
            num_scalar_prefetch=0,
            grid=(N,),
            in_specs=[
                pl.BlockSpec((1, Cin_p, HW), lambda n: (n, 0, 0)),
                pl.BlockSpec((Cout_p, 9 * Cin_p), lambda n: (0, 0)),
                pl.BlockSpec((Cout, K2), lambda n: (0, 0)),
                pl.BlockSpec((Cin_p, 1), lambda n: (0, 0)),
                pl.BlockSpec((Cin_p, 1), lambda n: (0, 0)),
                pl.BlockSpec((Cout_p, 1), lambda n: (0, 0)),
                pl.BlockSpec((Cout_p, 1), lambda n: (0, 0)),
            ],
            out_specs=pl.BlockSpec((1, Cout, HW), lambda n: (n, 0, 0)),
            scratch_shapes=[
                pltpu.VMEM((Cin_p, HW + 2 * LPAD), jnp.float32),   # pad buf 1
                pltpu.VMEM((Cout_p, HW + 2 * LPAD), jnp.float32),  # pad buf 2
                pltpu.VMEM((9 * Cin_p, HW), conv_dtype),           # im2col conv1
                pltpu.VMEM((p2_rows, HW), conv_dtype),             # im2col conv2
            ]),
        compiler_params=pltpu.CompilerParams(
            dimension_semantics=("parallel",),    # N images -> both TCs on v7x
            vmem_limit_bytes=_vmem_limit_bytes()),
    )(x_flat, w1m, w2m, s1, b1, s2, b2)

    return out_flat.reshape(N, Cout, H, W)          # (N, C, H*W) -> NCHW


def init_params(key, in_channels, out_channels, stride=1):
    # TODO(synk): stride > 1 downsampling blocks are not implemented.
    assert stride == 1, "kernel implements stride=1 only"
    ks = jax.random.split(key, 11)
    p = dict(
        w1=jax.random.normal(ks[0], (3, 3, in_channels, out_channels),
                             jnp.float32) * (2.0 / (9 * in_channels)) ** 0.5,
        w2=jax.random.normal(ks[1], (3, 3, out_channels, out_channels),
                             jnp.float32) * (2.0 / (9 * out_channels)) ** 0.5,
        bn1_gamma=jax.random.uniform(ks[3], (in_channels,), jnp.float32, 0.5, 1.5),
        bn1_beta=0.1 * jax.random.normal(ks[4], (in_channels,), jnp.float32),
        bn1_mean=0.1 * jax.random.normal(ks[5], (in_channels,), jnp.float32),
        bn1_var=jax.random.uniform(ks[6], (in_channels,), jnp.float32, 0.5, 1.5),
        bn2_gamma=jax.random.uniform(ks[7], (out_channels,), jnp.float32, 0.5, 1.5),
        bn2_beta=0.1 * jax.random.normal(ks[8], (out_channels,), jnp.float32),
        bn2_mean=0.1 * jax.random.normal(ks[9], (out_channels,), jnp.float32),
        bn2_var=jax.random.uniform(ks[10], (out_channels,), jnp.float32, 0.5, 1.5),
    )
    if in_channels != out_channels:      # identity shortcut otherwise (no wsc)
        p["wsc"] = jax.random.normal(ks[2], (in_channels, out_channels),
                                     jnp.float32) * (2.0 / in_channels) ** 0.5
    return p


def reference_forward(x_nchw, params, *, eps=1e-5):
    """Pure-JAX reference (XLA convs).  Matches the spec module: the shortcut
    (1x1 conv or identity) is applied to the RAW input x."""
    x = jnp.transpose(x_nchw, (0, 2, 3, 1)).astype(jnp.float32)

    def bn(v, g, b, m, var):
        return (v - m) * lax.rsqrt(var + eps) * g + b

    dn = ("NHWC", "HWIO", "NHWC")
    y = jax.nn.relu(bn(x, params["bn1_gamma"], params["bn1_beta"],
                       params["bn1_mean"], params["bn1_var"]))
    y = lax.conv_general_dilated(y, params["w1"], (1, 1), ((1, 1), (1, 1)),
                                 dimension_numbers=dn,
                                 precision=lax.Precision.HIGHEST)
    z = jax.nn.relu(bn(y, params["bn2_gamma"], params["bn2_beta"],
                       params["bn2_mean"], params["bn2_var"]))
    z = lax.conv_general_dilated(z, params["w2"], (1, 1), ((1, 1), (1, 1)),
                                 dimension_numbers=dn,
                                 precision=lax.Precision.HIGHEST)
    if "wsc" in params:
        sc = jnp.einsum("nhwc,cd->nhwd", x, params["wsc"],
                        precision=lax.Precision.HIGHEST)
    else:
        sc = x
    return jnp.transpose(z + sc, (0, 3, 1, 2))


if __name__ == "__main__":
    key = jax.random.PRNGKey(0)
    k_x, k_p = jax.random.split(key)

    N, Cin, H, W = 2, 4, 16, 16          # PyTorch NCHW input shape
    Cout, stride = 8, 1                  # in != out  ->  1x1-conv shortcut

    x_nchw = jax.random.normal(k_x, (N, Cin, H, W), jnp.float32)
    params = init_params(k_p, Cin, Cout, stride)

    out = preact_block_forward(x_nchw, params)
    out = jax.block_until_ready(out)

    assert out.shape == (N, Cout, H, W), out.shape

    ref = reference_forward(x_nchw, params)
    max_err = float(jnp.max(jnp.abs(out - ref)))
    assert jnp.allclose(out, ref, atol=5e-2, rtol=5e-2), ("max abs diff", max_err)

    print("KERNEL_OK")
</pallas_src>

<mosaic_0001>
module attributes {stable_mosaic.version = 11 : i64} {
  func.func @kernel(%arg0: i32, %arg1: memref<1x16x256xf32, #tpu.memory_space<vmem>>, %arg2: memref<16x144xbf16, #tpu.memory_space<vmem>>, %arg3: memref<8x160xbf16, #tpu.memory_space<vmem>>, %arg4: memref<16x1xf32, #tpu.memory_space<vmem>>, %arg5: memref<16x1xf32, #tpu.memory_space<vmem>>, %arg6: memref<16x1xf32, #tpu.memory_space<vmem>>, %arg7: memref<16x1xf32, #tpu.memory_space<vmem>>, %arg8: memref<1x8x256xf32, #tpu.memory_space<vmem>>, %arg9: memref<16x512xf32, #tpu.memory_space<vmem>>, %arg10: memref<16x512xf32, #tpu.memory_space<vmem>>, %arg11: memref<144x256xbf16, #tpu.memory_space<vmem>>, %arg12: memref<160x256xbf16, #tpu.memory_space<vmem>>) attributes {dimension_semantics = [#tpu.dimension_semantics<parallel>], iteration_bounds = array<i64: 2>, scalar_prefetch = 0 : i64, scratch_operands = 4 : i64, tpu.core_type = #tpu.core_type<tc>, window_params = [{transform_indices = @transform_0, window_bounds = array<i64: 1, 16, 256>}, {pipeline_mode = #tpu.pipeline_mode<synchronous>, transform_indices = @transform_1, window_bounds = array<i64: 16, 144>}, {pipeline_mode = #tpu.pipeline_mode<synchronous>, transform_indices = @transform_2, window_bounds = array<i64: 8, 160>}, {pipeline_mode = #tpu.pipeline_mode<synchronous>, transform_indices = @transform_3, window_bounds = array<i64: 16, 1>}, {pipeline_mode = #tpu.pipeline_mode<synchronous>, transform_indices = @transform_4, window_bounds = array<i64: 16, 1>}, {pipeline_mode = #tpu.pipeline_mode<synchronous>, transform_indices = @transform_5, window_bounds = array<i64: 16, 1>}, {pipeline_mode = #tpu.pipeline_mode<synchronous>, transform_indices = @transform_6, window_bounds = array<i64: 16, 1>}, {transform_indices = @transform_7, window_bounds = array<i64: 1, 8, 256>}]} {
    %0 = tpu.iota {dimensions = array<i32: 1>} : vector<1x256xi32>
    %c16_i32 = arith.constant 16 : i32
    %c0_i32 = arith.constant 0 : i32
    %1 = arith.cmpi eq, %c16_i32, %c0_i32 : i32
    %c1_i32 = arith.constant 1 : i32
    %2 = arith.select %1, %c1_i32, %c16_i32 : i32
    %3 = vector.broadcast %2 : i32 to vector<1x256xi32>
    %4 = arith.remsi %0, %3 : vector<1x256xi32>
    %c0_i32_0 = arith.constant 0 : i32
    %5 = vector.broadcast %c0_i32_0 : i32 to vector<1x256xi32>
    %6 = arith.cmpi ne, %4, %5 : vector<1x256xi32>
    %c0_i32_1 = arith.constant 0 : i32
    %7 = vector.broadcast %c0_i32_1 : i32 to vector<1x256xi32>
    %8 = arith.cmpi slt, %4, %7 : vector<1x256xi32>
    %c0_i32_2 = arith.constant 0 : i32
    %9 = arith.cmpi slt, %2, %c0_i32_2 : i32
    %10 = vector.broadcast %9 : i1 to vector<1x256xi1>
    %11 = vector.broadcast %10 : vector<1x256xi1> to vector<1x256xi1>
    %12 = arith.xori %8, %11 : vector<1x256xi1>
    %13 = arith.andi %12, %6 : vector<1x256xi1>
    %14 = vector.broadcast %2 : i32 to vector<1x256xi32>
    %15 = arith.addi %4, %14 : vector<1x256xi32>
    %16 = arith.select %13, %15, %4 : vector<1x256xi1>, vector<1x256xi32>
    %c16_i32_3 = arith.constant 16 : i32
    %17 = vector.broadcast %c16_i32_3 : i32 to vector<1x256xi32>
    %18 = arith.cmpi sge, %0, %17 : vector<1x256xi32>
    %c240_i32 = arith.constant 240 : i32
    %19 = vector.broadcast %c240_i32 : i32 to vector<1x256xi32>
    %20 = arith.cmpi slt, %0, %19 : vector<1x256xi32>
    %c1_i32_4 = arith.constant 1 : i32
    %21 = vector.broadcast %c1_i32_4 : i32 to vector<1x256xi32>
    %22 = arith.cmpi sge, %16, %21 : vector<1x256xi32>
    %c14_i32 = arith.constant 14 : i32
    %23 = vector.broadcast %c14_i32 : i32 to vector<1x256xi32>
    %24 = arith.cmpi sle, %16, %23 : vector<1x256xi32>
    %25 = arith.andi %18, %22 : vector<1x256xi1>
    %26 = arith.andi %18, %24 : vector<1x256xi1>
    %27 = arith.andi %20, %22 : vector<1x256xi1>
    %28 = arith.andi %20, %24 : vector<1x256xi1>
    %c0 = arith.constant 0 : index
    %c0_5 = arith.constant 0 : index
    %c0_6 = arith.constant 0 : index
    %29 = vector.load %arg1[%c0, %c0_5, %c0_6] : memref<1x16x256xf32, #tpu.memory_space<vmem>>, vector<1x16x256xf32>
    %30 = vector.shape_cast %29 : vector<1x16x256xf32> to vector<16x256xf32>
    %c0_7 = arith.constant 0 : index
    %c0_8 = arith.constant 0 : index
    %31 = vector.load %arg4[%c0_7, %c0_8] : memref<16x1xf32, #tpu.memory_space<vmem>>, vector<16x1xf32>
    %32 = vector.broadcast %31 : vector<16x1xf32> to vector<16x256xf32>
    %33 = arith.mulf %30, %32 : vector<16x256xf32>
    %c0_9 = arith.constant 0 : index
    %c0_10 = arith.constant 0 : index
    %34 = vector.load %arg5[%c0_9, %c0_10] : memref<16x1xf32, #tpu.memory_space<vmem>>, vector<16x1xf32>
    %35 = vector.broadcast %34 : vector<16x1xf32> to vector<16x256xf32>
    %36 = arith.addf %33, %35 : vector<16x256xf32>
    %cst = arith.constant 0.000000e+00 : f32
    %37 = vector.broadcast %cst : f32 to vector<16x256xf32>
    %38 = arith.maximumf %36, %37 : vector<16x256xf32>
    %c0_11 = arith.constant 0 : index
    %c128 = arith.constant 128 : index
    %39 = vector.load %arg9[%c0_11, %c128] : memref<16x512xf32, #tpu.memory_space<vmem>>, vector<16x256xf32>
    tpu.vector_store %arg9[%c0_11, %c128], %38 {strides = array<i32>} : memref<16x512xf32, #tpu.memory_space<vmem>>, vector<16x256xf32>,
    %c0_12 = arith.constant 0 : index
    %c111 = arith.constant 111 : index
    %40 = vector.load %arg9[%c0_12, %c111] : memref<16x512xf32, #tpu.memory_space<vmem>>, vector<16x256xf32>
    %cst_13 = arith.constant 0.000000e+00 : f32
    %41 = vector.shape_cast %25 : vector<1x256xi1> to vector<1x256xi1>
    %42 = vector.broadcast %41 : vector<1x256xi1> to vector<16x256xi1>
    %43 = vector.broadcast %cst_13 : f32 to vector<16x256xf32>
    %44 = arith.select %42, %40, %43 : vector<16x256xi1>, vector<16x256xf32>
    %45 = arith.truncf %44 : vector<16x256xf32> to vector<16x256xbf16>
    %c0_14 = arith.constant 0 : index
    %c0_15 = arith.constant 0 : index
    %46 = vector.load %arg11[%c0_14, %c0_15] : memref<144x256xbf16, #tpu.memory_space<vmem>>, vector<16x256xbf16>
    tpu.vector_store %arg11[%c0_14, %c0_15], %45 {strides = array<i32>} : memref<144x256xbf16, #tpu.memory_space<vmem>>, vector<16x256xbf16>,
    %c0_16 = arith.constant 0 : index
    %c112 = arith.constant 112 : index
    %47 = vector.load %arg9[%c0_16, %c112] : memref<16x512xf32, #tpu.memory_space<vmem>>, vector<16x256xf32>
    %cst_17 = arith.constant 0.000000e+00 : f32
    %48 = vector.shape_cast %18 : vector<1x256xi1> to vector<1x256xi1>
    %49 = vector.broadcast %48 : vector<1x256xi1> to vector<16x256xi1>
    %50 = vector.broadcast %cst_17 : f32 to vector<16x256xf32>
    %51 = arith.select %49, %47, %50 : vector<16x256xi1>, vector<16x256xf32>
    %52 = arith.truncf %51 : vector<16x256xf32> to vector<16x256xbf16>
    %c16 = arith.constant 16 : index
    %c0_18 = arith.constant 0 : index
    %53 = vector.load %arg11[%c16, %c0_18] : memref<144x256xbf16, #tpu.memory_space<vmem>>, vector<16x256xbf16>
    tpu.vector_store %arg11[%c16, %c0_18], %52 {strides = array<i32>} : memref<144x256xbf16, #tpu.memory_space<vmem>>, vector<16x256xbf16>,
    %c0_19 = arith.constant 0 : index
    %c113 = arith.constant 113 : index
    %54 = vector.load %arg9[%c0_19, %c113] : memref<16x512xf32, #tpu.memory_space<vmem>>, vector<16x256xf32>
    %cst_20 = arith.constant 0.000000e+00 : f32
    %55 = vector.shape_cast %26 : vector<1x256xi1> to vector<1x256xi1>
    %56 = vector.broadcast %55 : vector<1x256xi1> to vector<16x256xi1>
    %57 = vector.broadcast %cst_20 : f32 to vector<16x256xf32>
    %58 = arith.select %56, %54, %57 : vector<16x256xi1>, vector<16x256xf32>
    %59 = arith.truncf %58 : vector<16x256xf32> to vector<16x256xbf16>
    %c32 = arith.constant 32 : index
    %c0_21 = arith.constant 0 : index
    %60 = vector.load %arg11[%c32, %c0_21] : memref<144x256xbf16, #tpu.memory_space<vmem>>, vector<16x256xbf16>
    tpu.vector_store %arg11[%c32, %c0_21], %59 {strides = array<i32>} : memref<144x256xbf16, #tpu.memory_space<vmem>>, vector<16x256xbf16>,
    %c0_22 = arith.constant 0 : index
    %c127 = arith.constant 127 : index
    %61 = vector.load %arg9[%c0_22, %c127] : memref<16x512xf32, #tpu.memory_space<vmem>>, vector<16x256xf32>
    %cst_23 = arith.constant 0.000000e+00 : f32
    %62 = vector.shape_cast %22 : vector<1x256xi1> to vector<1x256xi1>
    %63 = vector.broadcast %62 : vector<1x256xi1> to vector<16x256xi1>
    %64 = vector.broadcast %cst_23 : f32 to vector<16x256xf32>
    %65 = arith.select %63, %61, %64 : vector<16x256xi1>, vector<16x256xf32>
    %66 = arith.truncf %65 : vector<16x256xf32> to vector<16x256xbf16>
    %c48 = arith.constant 48 : index
    %c0_24 = arith.constant 0 : index
    %67 = vector.load %arg11[%c48, %c0_24] : memref<144x256xbf16, #tpu.memory_space<vmem>>, vector<16x256xbf16>
    tpu.vector_store %arg11[%c48, %c0_24], %66 {strides = array<i32>} : memref<144x256xbf16, #tpu.memory_space<vmem>>, vector<16x256xbf16>,
    %c0_25 = arith.constant 0 : index
    %c128_26 = arith.constant 128 : index
    %68 = vector.load %arg9[%c0_25, %c128_26] : memref<16x512xf32, #tpu.memory_space<vmem>>, vector<16x256xf32>
    %69 = arith.truncf %68 : vector<16x256xf32> to vector<16x256xbf16>
    %c64 = arith.constant 64 : index
    %c0_27 = arith.constant 0 : index
    %70 = vector.load %arg11[%c64, %c0_27] : memref<144x256xbf16, #tpu.memory_space<vmem>>, vector<16x256xbf16>
    tpu.vector_store %arg11[%c64, %c0_27], %69 {strides = array<i32>} : memref<144x256xbf16, #tpu.memory_space<vmem>>, vector<16x256xbf16>,
    %c0_28 = arith.constant 0 : index
    %c129 = arith.constant 129 : index
    %71 = vector.load %arg9[%c0_28, %c129] : memref<16x512xf32, #tpu.memory_space<vmem>>, vector<16x256xf32>
    %cst_29 = arith.constant 0.000000e+00 : f32
    %72 = vector.shape_cast %24 : vector<1x256xi1> to vector<1x256xi1>
    %73 = vector.broadcast %72 : vector<1x256xi1> to vector<16x256xi1>
    %74 = vector.broadcast %cst_29 : f32 to vector<16x256xf32>
    %75 = arith.select %73, %71, %74 : vector<16x256xi1>, vector<16x256xf32>
    %76 = arith.truncf %75 : vector<16x256xf32> to vector<16x256xbf16>
    %c80 = arith.constant 80 : index
    %c0_30 = arith.constant 0 : index
    %77 = vector.load %arg11[%c80, %c0_30] : memref<144x256xbf16, #tpu.memory_space<vmem>>, vector<16x256xbf16>
    tpu.vector_store %arg11[%c80, %c0_30], %76 {strides = array<i32>} : memref<144x256xbf16, #tpu.memory_space<vmem>>, vector<16x256xbf16>,
    %c0_31 = arith.constant 0 : index
    %c143 = arith.constant 143 : index
    %78 = vector.load %arg9[%c0_31, %c143] : memref<16x512xf32, #tpu.memory_space<vmem>>, vector<16x256xf32>
    %cst_32 = arith.constant 0.000000e+00 : f32
    %79 = vector.shape_cast %27 : vector<1x256xi1> to vector<1x256xi1>
    %80 = vector.broadcast %79 : vector<1x256xi1> to vector<16x256xi1>
    %81 = vector.broadcast %cst_32 : f32 to vector<16x256xf32>
    %82 = arith.select %80, %78, %81 : vector<16x256xi1>, vector<16x256xf32>
    %83 = arith.truncf %82 : vector<16x256xf32> to vector<16x256xbf16>
    %c96 = arith.constant 96 : index
    %c0_33 = arith.constant 0 : index
    %84 = vector.load %arg11[%c96, %c0_33] : memref<144x256xbf16, #tpu.memory_space<vmem>>, vector<16x256xbf16>
    tpu.vector_store %arg11[%c96, %c0_33], %83 {strides = array<i32>} : memref<144x256xbf16, #tpu.memory_space<vmem>>, vector<16x256xbf16>,
    %c0_34 = arith.constant 0 : index
    %c144 = arith.constant 144 : index
    %85 = vector.load %arg9[%c0_34, %c144] : memref<16x512xf32, #tpu.memory_space<vmem>>, vector<16x256xf32>
    %cst_35 = arith.constant 0.000000e+00 : f32
    %86 = vector.shape_cast %20 : vector<1x256xi1> to vector<1x256xi1>
    %87 = vector.broadcast %86 : vector<1x256xi1> to vector<16x256xi1>
    %88 = vector.broadcast %cst_35 : f32 to vector<16x256xf32>
    %89 = arith.select %87, %85, %88 : vector<16x256xi1>, vector<16x256xf32>
    %90 = arith.truncf %89 : vector<16x256xf32> to vector<16x256xbf16>
    %c112_36 = arith.constant 112 : index
    %c0_37 = arith.constant 0 : index
    %91 = vector.load %arg11[%c112_36, %c0_37] : memref<144x256xbf16, #tpu.memory_space<vmem>>, vector<16x256xbf16>
    tpu.vector_store %arg11[%c112_36, %c0_37], %90 {strides = array<i32>} : memref<144x256xbf16, #tpu.memory_space<vmem>>, vector<16x256xbf16>,
    %c0_38 = arith.constant 0 : index
    %c145 = arith.constant 145 : index
    %92 = vector.load %arg9[%c0_38, %c145] : memref<16x512xf32, #tpu.memory_space<vmem>>, vector<16x256xf32>
    %cst_39 = arith.constant 0.000000e+00 : f32
    %93 = vector.shape_cast %28 : vector<1x256xi1> to vector<1x256xi1>
    %94 = vector.broadcast %93 : vector<1x256xi1> to vector<16x256xi1>
    %95 = vector.broadcast %cst_39 : f32 to vector<16x256xf32>
    %96 = arith.select %94, %92, %95 : vector<16x256xi1>, vector<16x256xf32>
    %97 = arith.truncf %96 : vector<16x256xf32> to vector<16x256xbf16>
    %c128_40 = arith.constant 128 : index
    %c0_41 = arith.constant 0 : index
    %98 = vector.load %arg11[%c128_40, %c0_41] : memref<144x256xbf16, #tpu.memory_space<vmem>>, vector<16x256xbf16>
    tpu.vector_store %arg11[%c128_40, %c0_41], %97 {strides = array<i32>} : memref<144x256xbf16, #tpu.memory_space<vmem>>, vector<16x256xbf16>,
    %c0_42 = arith.constant 0 : index
    %c0_43 = arith.constant 0 : index
    %99 = vector.load %arg2[%c0_42, %c0_43] : memref<16x144xbf16, #tpu.memory_space<vmem>>, vector<16x144xbf16>
    %c0_44 = arith.constant 0 : index
    %c0_45 = arith.constant 0 : index
    %100 = vector.load %arg11[%c0_44, %c0_45] : memref<144x256xbf16, #tpu.memory_space<vmem>>, vector<144x256xbf16>
    %cst_46 = arith.constant dense<0.000000e+00> : vector<16x256xf32>
    %101 = tpu.matmul %99, %100, %cst_46 {dimension_numbers = #tpu.dot_dimension_numbers<[1], [0], [0], [1], [0, 0, 1, 1], [], []>} : vector<16x144xbf16>, vector<144x256xbf16>, vector<16x256xf32> -> vector<16x256xf32>
    %c0_47 = arith.constant 0 : index
    %c0_48 = arith.constant 0 : index
    %102 = vector.load %arg6[%c0_47, %c0_48] : memref<16x1xf32, #tpu.memory_space<vmem>>, vector<16x1xf32>
    %103 = vector.broadcast %102 : vector<16x1xf32> to vector<16x256xf32>
    %104 = arith.mulf %101, %103 : vector<16x256xf32>
    %c0_49 = arith.constant 0 : index
    %c0_50 = arith.constant 0 : index
    %105 = vector.load %arg7[%c0_49, %c0_50] : memref<16x1xf32, #tpu.memory_space<vmem>>, vector<16x1xf32>
    %106 = vector.broadcast %105 : vector<16x1xf32> to vector<16x256xf32>
    %107 = arith.addf %104, %106 : vector<16x256xf32>
    %cst_51 = arith.constant 0.000000e+00 : f32
    %108 = vector.broadcast %cst_51 : f32 to vector<16x256xf32>
    %109 = arith.maximumf %107, %108 : vector<16x256xf32>
    %c0_52 = arith.constant 0 : index
    %c128_53 = arith.constant 128 : index
    %110 = vector.load %arg10[%c0_52, %c128_53] : memref<16x512xf32, #tpu.memory_space<vmem>>, vector<16x256xf32>
    tpu.vector_store %arg10[%c0_52, %c128_53], %109 {strides = array<i32>} : memref<16x512xf32, #tpu.memory_space<vmem>>, vector<16x256xf32>,
    %c0_54 = arith.constant 0 : index
    %c111_55 = arith.constant 111 : index
    %111 = vector.load %arg10[%c0_54, %c111_55] : memref<16x512xf32, #tpu.memory_space<vmem>>, vector<16x256xf32>
    %cst_56 = arith.constant 0.000000e+00 : f32
    %112 = vector.shape_cast %25 : vector<1x256xi1> to vector<1x256xi1>
    %113 = vector.broadcast %112 : vector<1x256xi1> to vector<16x256xi1>
    %114 = vector.broadcast %cst_56 : f32 to vector<16x256xf32>
    %115 = arith.select %113, %111, %114 : vector<16x256xi1>, vector<16x256xf32>
    %116 = arith.truncf %115 : vector<16x256xf32> to vector<16x256xbf16>
    %c0_57 = arith.constant 0 : index
    %c0_58 = arith.constant 0 : index
    %117 = vector.load %arg12[%c0_57, %c0_58] : memref<160x256xbf16, #tpu.memory_space<vmem>>, vector<16x256xbf16>
    tpu.vector_store %arg12[%c0_57, %c0_58], %116 {strides = array<i32>} : memref<160x256xbf16, #tpu.memory_space<vmem>>, vector<16x256xbf16>,
    %c0_59 = arith.constant 0 : index
    %c112_60 = arith.constant 112 : index
    %118 = vector.load %arg10[%c0_59, %c112_60] : memref<16x512xf32, #tpu.memory_space<vmem>>, vector<16x256xf32>
    %cst_61 = arith.constant 0.000000e+00 : f32
    %119 = vector.shape_cast %18 : vector<1x256xi1> to vector<1x256xi1>
    %120 = vector.broadcast %119 : vector<1x256xi1> to vector<16x256xi1>
    %121 = vector.broadcast %cst_61 : f32 to vector<16x256xf32>
    %122 = arith.select %120, %118, %121 : vector<16x256xi1>, vector<16x256xf32>
    %123 = arith.truncf %122 : vector<16x256xf32> to vector<16x256xbf16>
    %c16_62 = arith.constant 16 : index
    %c0_63 = arith.constant 0 : index
    %124 = vector.load %arg12[%c16_62, %c0_63] : memref<160x256xbf16, #tpu.memory_space<vmem>>, vector<16x256xbf16>
    tpu.vector_store %arg12[%c16_62, %c0_63], %123 {strides = array<i32>} : memref<160x256xbf16, #tpu.memory_space<vmem>>, vector<16x256xbf16>,
    %c0_64 = arith.constant 0 : index
    %c113_65 = arith.constant 113 : index
    %125 = vector.load %arg10[%c0_64, %c113_65] : memref<16x512xf32, #tpu.memory_space<vmem>>, vector<16x256xf32>
    %cst_66 = arith.constant 0.000000e+00 : f32
    %126 = vector.shape_cast %26 : vector<1x256xi1> to vector<1x256xi1>
    %127 = vector.broadcast %126 : vector<1x256xi1> to vector<16x256xi1>
    %128 = vector.broadcast %cst_66 : f32 to vector<16x256xf32>
    %129 = arith.select %127, %125, %128 : vector<16x256xi1>, vector<16x256xf32>
    %130 = arith.truncf %129 : vector<16x256xf32> to vector<16x256xbf16>
    %c32_67 = arith.constant 32 : index
    %c0_68 = arith.constant 0 : index
    %131 = vector.load %arg12[%c32_67, %c0_68] : memref<160x256xbf16, #tpu.memory_space<vmem>>, vector<16x256xbf16>
    tpu.vector_store %arg12[%c32_67, %c0_68], %130 {strides = array<i32>} : memref<160x256xbf16, #tpu.memory_space<vmem>>, vector<16x256xbf16>,
    %c0_69 = arith.constant 0 : index
    %c127_70 = arith.constant 127 : index
    %132 = vector.load %arg10[%c0_69, %c127_70] : memref<16x512xf32, #tpu.memory_space<vmem>>, vector<16x256xf32>
    %cst_71 = arith.constant 0.000000e+00 : f32
    %133 = vector.shape_cast %22 : vector<1x256xi1> to vector<1x256xi1>
    %134 = vector.broadcast %133 : vector<1x256xi1> to vector<16x256xi1>
    %135 = vector.broadcast %cst_71 : f32 to vector<16x256xf32>
    %136 = arith.select %134, %132, %135 : vector<16x256xi1>, vector<16x256xf32>
    %137 = arith.truncf %136 : vector<16x256xf32> to vector<16x256xbf16>
    %c48_72 = arith.constant 48 : index
    %c0_73 = arith.constant 0 : index
    %138 = vector.load %arg12[%c48_72, %c0_73] : memref<160x256xbf16, #tpu.memory_space<vmem>>, vector<16x256xbf16>
    tpu.vector_store %arg12[%c48_72, %c0_73], %137 {strides = array<i32>} : memref<160x256xbf16, #tpu.memory_space<vmem>>, vector<16x256xbf16>,
    %c0_74 = arith.constant 0 : index
    %c128_75 = arith.constant 128 : index
    %139 = vector.load %arg10[%c0_74, %c128_75] : memref<16x512xf32, #tpu.memory_space<vmem>>, vector<16x256xf32>
    %140 = arith.truncf %139 : vector<16x256xf32> to vector<16x256xbf16>
    %c64_76 = arith.constant 64 : index
    %c0_77 = arith.constant 0 : index
    %141 = vector.load %arg12[%c64_76, %c0_77] : memref<160x256xbf16, #tpu.memory_space<vmem>>, vector<16x256xbf16>
    tpu.vector_store %arg12[%c64_76, %c0_77], %140 {strides = array<i32>} : memref<160x256xbf16, #tpu.memory_space<vmem>>, vector<16x256xbf16>,
    %c0_78 = arith.constant 0 : index
    %c129_79 = arith.constant 129 : index
    %142 = vector.load %arg10[%c0_78, %c129_79] : memref<16x512xf32, #tpu.memory_space<vmem>>, vector<16x256xf32>
    %cst_80 = arith.constant 0.000000e+00 : f32
    %143 = vector.shape_cast %24 : vector<1x256xi1> to vector<1x256xi1>
    %144 = vector.broadcast %143 : vector<1x256xi1> to vector<16x256xi1>
    %145 = vector.broadcast %cst_80 : f32 to vector<16x256xf32>
    %146 = arith.select %144, %142, %145 : vector<16x256xi1>, vector<16x256xf32>
    %147 = arith.truncf %146 : vector<16x256xf32> to vector<16x256xbf16>
    %c80_81 = arith.constant 80 : index
    %c0_82 = arith.constant 0 : index
    %148 = vector.load %arg12[%c80_81, %c0_82] : memref<160x256xbf16, #tpu.memory_space<vmem>>, vector<16x256xbf16>
    tpu.vector_store %arg12[%c80_81, %c0_82], %147 {strides = array<i32>} : memref<160x256xbf16, #tpu.memory_space<vmem>>, vector<16x256xbf16>,
    %c0_83 = arith.constant 0 : index
    %c143_84 = arith.constant 143 : index
    %149 = vector.load %arg10[%c0_83, %c143_84] : memref<16x512xf32, #tpu.memory_space<vmem>>, vector<16x256xf32>
    %cst_85 = arith.constant 0.000000e+00 : f32
    %150 = vector.shape_cast %27 : vector<1x256xi1> to vector<1x256xi1>
    %151 = vector.broadcast %150 : vector<1x256xi1> to vector<16x256xi1>
    %152 = vector.broadcast %cst_85 : f32 to vector<16x256xf32>
    %153 = arith.select %151, %149, %152 : vector<16x256xi1>, vector<16x256xf32>
    %154 = arith.truncf %153 : vector<16x256xf32> to vector<16x256xbf16>
    %c96_86 = arith.constant 96 : index
    %c0_87 = arith.constant 0 : index
    %155 = vector.load %arg12[%c96_86, %c0_87] : memref<160x256xbf16, #tpu.memory_space<vmem>>, vector<16x256xbf16>
    tpu.vector_store %arg12[%c96_86, %c0_87], %154 {strides = array<i32>} : memref<160x256xbf16, #tpu.memory_space<vmem>>, vector<16x256xbf16>,
    %c0_88 = arith.constant 0 : index
    %c144_89 = arith.constant 144 : index
    %156 = vector.load %arg10[%c0_88, %c144_89] : memref<16x512xf32, #tpu.memory_space<vmem>>, vector<16x256xf32>
    %cst_90 = arith.constant 0.000000e+00 : f32
    %157 = vector.shape_cast %20 : vector<1x256xi1> to vector<1x256xi1>
    %158 = vector.broadcast %157 : vector<1x256xi1> to vector<16x256xi1>
    %159 = vector.broadcast %cst_90 : f32 to vector<16x256xf32>
    %160 = arith.select %158, %156, %159 : vector<16x256xi1>, vector<16x256xf32>
    %161 = arith.truncf %160 : vector<16x256xf32> to vector<16x256xbf16>
    %c112_91 = arith.constant 112 : index
    %c0_92 = arith.constant 0 : index
    %162 = vector.load %arg12[%c112_91, %c0_92] : memref<160x256xbf16, #tpu.memory_space<vmem>>, vector<16x256xbf16>
    tpu.vector_store %arg12[%c112_91, %c0_92], %161 {strides = array<i32>} : memref<160x256xbf16, #tpu.memory_space<vmem>>, vector<16x256xbf16>,
    %c0_93 = arith.constant 0 : index
    %c145_94 = arith.constant 145 : index
    %163 = vector.load %arg10[%c0_93, %c145_94] : memref<16x512xf32, #tpu.memory_space<vmem>>, vector<16x256xf32>
    %cst_95 = arith.constant 0.000000e+00 : f32
    %164 = vector.shape_cast %28 : vector<1x256xi1> to vector<1x256xi1>
    %165 = vector.broadcast %164 : vector<1x256xi1> to vector<16x256xi1>
    %166 = vector.broadcast %cst_95 : f32 to vector<16x256xf32>
    %167 = arith.select %165, %163, %166 : vector<16x256xi1>, vector<16x256xf32>
    %168 = arith.truncf %167 : vector<16x256xf32> to vector<16x256xbf16>
    %c128_96 = arith.constant 128 : index
    %c0_97 = arith.constant 0 : index
    %169 = vector.load %arg12[%c128_96, %c0_97] : memref<160x256xbf16, #tpu.memory_space<vmem>>, vector<16x256xbf16>
    tpu.vector_store %arg12[%c128_96, %c0_97], %168 {strides = array<i32>} : memref<160x256xbf16, #tpu.memory_space<vmem>>, vector<16x256xbf16>,
    %170 = arith.truncf %30 : vector<16x256xf32> to vector<16x256xbf16>
    %c144_98 = arith.constant 144 : index
    %c0_99 = arith.constant 0 : index
    %171 = vector.load %arg12[%c144_98, %c0_99] : memref<160x256xbf16, #tpu.memory_space<vmem>>, vector<16x256xbf16>
    tpu.vector_store %arg12[%c144_98, %c0_99], %170 {strides = array<i32>} : memref<160x256xbf16, #tpu.memory_space<vmem>>, vector<16x256xbf16>,
    %c0_100 = arith.constant 0 : index
    %c0_101 = arith.constant 0 : index
    %172 = vector.load %arg3[%c0_100, %c0_101] : memref<8x160xbf16, #tpu.memory_space<vmem>>, vector<8x160xbf16>
    %c0_102 = arith.constant 0 : index
    %c0_103 = arith.constant 0 : index
    %173 = vector.load %arg12[%c0_102, %c0_103] : memref<160x256xbf16, #tpu.memory_space<vmem>>, vector<160x256xbf16>
    %cst_104 = arith.constant dense<0.000000e+00> : vector<8x256xf32>
    %174 = tpu.matmul %172, %173, %cst_104 {dimension_numbers = #tpu.dot_dimension_numbers<[1], [0], [0], [1], [0, 0, 1, 1], [], []>} : vector<8x160xbf16>, vector<160x256xbf16>, vector<8x256xf32> -> vector<8x256xf32>
    %c0_105 = arith.constant 0 : index
    %c0_106 = arith.constant 0 : index
    %c0_107 = arith.constant 0 : index
    %175 = vector.load %arg8[%c0_105, %c0_106, %c0_107] : memref<1x8x256xf32, #tpu.memory_space<vmem>>, vector<1x8x256xf32>
    %176 = vector.shape_cast %175 : vector<1x8x256xf32> to vector<8x256xf32>
    %177 = vector.shape_cast %174 : vector<8x256xf32> to vector<1x8x256xf32>
    tpu.vector_store %arg8[%c0_105, %c0_106, %c0_107], %177 {strides = array<i32>} : memref<1x8x256xf32, #tpu.memory_space<vmem>>, vector<1x8x256xf32>,
    return
  }
  func.func @transform_0(%arg0: i32) -> (i32, i32, i32) {
    %c0_i32 = arith.constant 0 : i32
    %c0_i32_0 = arith.constant 0 : i32
    %c0_i32_1 = arith.constant 0 : i32
    return %arg0, %c0_i32, %c0_i32_0 : i32, i32, i32
  }
  func.func @transform_1(%arg0: i32) -> (i32, i32) {
    %c0_i32 = arith.constant 0 : i32
    %c0_i32_0 = arith.constant 0 : i32
    %c0_i32_1 = arith.constant 0 : i32
    return %c0_i32, %c0_i32_0 : i32, i32
  }
  func.func @transform_2(%arg0: i32) -> (i32, i32) {
    %c0_i32 = arith.constant 0 : i32
    %c0_i32_0 = arith.constant 0 : i32
    %c0_i32_1 = arith.constant 0 : i32
    return %c0_i32, %c0_i32_0 : i32, i32
  }
  func.func @transform_3(%arg0: i32) -> (i32, i32) {
    %c0_i32 = arith.constant 0 : i32
    %c0_i32_0 = arith.constant 0 : i32
    %c0_i32_1 = arith.constant 0 : i32
    return %c0_i32, %c0_i32_0 : i32, i32
  }
  func.func @transform_4(%arg0: i32) -> (i32, i32) {
    %c0_i32 = arith.constant 0 : i32
    %c0_i32_0 = arith.constant 0 : i32
    %c0_i32_1 = arith.constant 0 : i32
    return %c0_i32, %c0_i32_0 : i32, i32
  }
  func.func @transform_5(%arg0: i32) -> (i32, i32) {
    %c0_i32 = arith.constant 0 : i32
    %c0_i32_0 = arith.constant 0 : i32
    %c0_i32_1 = arith.constant 0 : i32
    return %c0_i32, %c0_i32_0 : i32, i32
  }
  func.func @transform_6(%arg0: i32) -> (i32, i32) {
    %c0_i32 = arith.constant 0 : i32
    %c0_i32_0 = arith.constant 0 : i32
    %c0_i32_1 = arith.constant 0 : i32
    return %c0_i32, %c0_i32_0 : i32, i32
  }
  func.func @transform_7(%arg0: i32) -> (i32, i32, i32) {
    %c0_i32 = arith.constant 0 : i32
    %c0_i32_0 = arith.constant 0 : i32
    %c0_i32_1 = arith.constant 0 : i32
    return %arg0, %c0_i32, %c0_i32_0 : i32, i32, i32
  }
}

</mosaic_0001>

<llo_original>
// kernel: tpu_custom_call.1
$region0: #{tpu_custom_call.1}
  #allocation0 [shape = 'u32[]', space=smem, size = 0x4, offset = 0x4, fixed_abs, tag = 'smem constant byte address 0x4 - core index']
  #allocation1 [shape = 'u32[144,128]{1,0:T(1,128)}', space=vmem, size = 0x12000, scoped, tag = 'internal scratch']
  #allocation2 [shape = 'f32[16,512]{1,0:T(8,128)}', space=vmem, size = 0x8000, scoped, tag = 'scratch operand']
  #allocation3 [shape = 'f32[16,512]{1,0:T(8,128)}', space=vmem, size = 0x8000, scoped, tag = 'scratch operand']
  #allocation4 [shape = 'bf16[144,256]{1,0:T(16,128)(2,1)}', space=vmem, size = 0x12000, scoped, tag = 'scratch operand']
  #allocation5 [shape = 'bf16[160,256]{1,0:T(16,128)(2,1)}', space=vmem, size = 0x14000, scoped, tag = 'scratch operand']
  %s0 = inlined_call_operand.hbm [shape: f32[2,16,256], index: 0, kind: input, shape index: {}]
  %s1 = inlined_call_operand.hbm [shape: bf16[16,144], index: 1, kind: input, shape index: {}]
  %s2 = inlined_call_operand.hbm [shape: bf16[8,160], index: 2, kind: input, shape index: {}]
  %s3 = inlined_call_operand.hbm [shape: f32[16,1], index: 3, kind: input, shape index: {}]
  %s4 = inlined_call_operand.hbm [shape: f32[16,1], index: 4, kind: input, shape index: {}]
  %s5 = inlined_call_operand.hbm [shape: f32[16,1], index: 5, kind: input, shape index: {}]
  %s6 = inlined_call_operand.hbm [shape: f32[16,1], index: 6, kind: input, shape index: {}]
  %s7 = inlined_call_operand.hbm [shape: f32[2,8,256], index: 7, kind: output, shape index: {}]
  %s8 = sld [smem:[#allocation0]]
  $region89: #{tpu_custom_call.1} parent=0
    _
  %s10 = ssub.s32 1, %s8
  %s11 = scalar_select 0, %s10, %s8
  $region1: #{tpu_custom_call.1} parent=0
    #allocation6 [shape = 'u8[32768]{0}', space=vmem, size = 0x8000, scoped, tag = 'input window, operand 0']
    #allocation7 [shape = 's32[2]{0}', space=sflag, size = 0x8, scoped, tag = 'scoped memory for tpu_custom_call.1']
    #allocation8 [shape = 's32[2]{0}', space=sflag, size = 0x8, scoped, tag = 'scoped memory for tpu_custom_call.1']
    #allocation9 [shape = 'u8[8192]{0}', space=vmem, size = 0x2000, scoped, tag = 'input window, operand 1, single buffered']
    #allocation10 [shape = 's32[1]{0}', space=sflag, size = 0x4, scoped, tag = 'scoped memory for tpu_custom_call.1']
    #allocation11 [shape = 'u8[4096]{0}', space=vmem, size = 0x1000, scoped, tag = 'input window, operand 2, single buffered']
    #allocation12 [shape = 'u8[8192]{0}', space=vmem, size = 0x2000, scoped, tag = 'input window, operand 3, single buffered']
    #allocation13 [shape = 's32[1]{0}', space=sflag, size = 0x4, scoped, tag = 'scoped memory for tpu_custom_call.1']
    #allocation14 [shape = 'u8[8192]{0}', space=vmem, size = 0x2000, scoped, tag = 'input window, operand 4, single buffered']
    #allocation15 [shape = 'u8[8192]{0}', space=vmem, size = 0x2000, scoped, tag = 'input window, operand 5, single buffered']
    #allocation16 [shape = 's32[1]{0}', space=sflag, size = 0x4, scoped, tag = 'scoped memory for tpu_custom_call.1']
    #allocation17 [shape = 'u8[8192]{0}', space=vmem, size = 0x2000, scoped, tag = 'input window, operand 6, single buffered']
    #allocation18 [shape = 'u8[16384]{0}', space=vmem, size = 0x4000, scoped, tag = 'output window, operand 0']
    %12 = vsyncpa [#allocation7], 0
    %s13 = scalar_lea.sflag [#allocation7], 1
    %14 = vsyncpa %s13, 0
    %15 = vsyncpa [#allocation10], 0
    %16 = vsyncpa [#allocation13], 0
    %17 = vsyncpa [#allocation16], 0
    %18 = vsyncpa [#allocation8], 0
    %s19 = scalar_lea.sflag [#allocation8], 1
    %20 = vsyncpa %s19, 0
    loop: start=0, step=1, limit=4
    $region2: #{tpu_custom_call.1} parent=1 // loop_pre_header
      _
    $region3: #{tpu_custom_call.1} parent=1 // loop_header
      %s22 = sphi 0, %s26
      %p23 = scmp.ge.s32.totalorder %s22, 4
      %s32 = sphi 0, %s34
      %s35 = sphi 0, %s32
      %s36 = sphi 0, %s35
      %s52 = sphi 0, %s36
      %s56 = sphi 0, %s56
      %s58 = sphi 0, %s56
      %s59 = sphi 0, %s58
      %s73 = sphi 0, %s59
      %s77 = sphi 0, %s77
      %s79 = sphi 0, %s77
      %s80 = sphi 0, %s79
      %s94 = sphi 0, %s80
      %s98 = sphi 0, %s98
      %s100 = sphi 0, %s98
      %s101 = sphi 0, %s100
      %s115 = sphi 0, %s101
      %s119 = sphi 0, %s119
      %s121 = sphi 0, %s119
      %s122 = sphi 0, %s121
      %s136 = sphi 0, %s122
      %s140 = sphi 0, %s140
      %s142 = sphi 0, %s140
      %s143 = sphi 0, %s142
      %s157 = sphi 0, %s143
      %s161 = sphi 0, %s161
      %s163 = sphi 0, %s161
      %s164 = sphi 0, %s163
      %s178 = sphi 0, %s164
      %s184 = sphi 0, %s186
      %s187 = sphi 0, %s184
      %s188 = sphi 0, %s187
      %s204 = sphi 0, %s188
    $region4: #{tpu_custom_call.1} parent=1 // loop_header_branch
      %25 = sbr.rel (%p23) target = $region8
    $region5: #{tpu_custom_call.1} parent=1 // loop_body
      %s27 = ssub.s32 %s22, 1
      %s28 = ssub.s32 %s22, 2
      %s29 = sadd.s32 %s22, 1
      %s30 = ssub.s32 %s22, %s29
      %p31 = scmp.eq.s32.totalorder %s30, 0
      %s33 = sadd.s32 %s32, 1
      %s34 = scalar_select %p31, %s32, %s33
      %p37 = pneg %p31
      %p38 = scmp.eq.s32.totalorder %s22, 1
      %p39 = por %p37, %p38
      %p40 = scmp.ne.s32.totalorder %s32, %s35
      %p41 = scmp.eq.s32.totalorder %s22, 0
      %p42 = por %p40, %p41
      %p43 = scmp.ne.s32.totalorder %s32, %s35
      %p44 = scmp.eq.s32.totalorder %s27, 1
      %p45 = por %p43, %p44
      %p46 = scmp.ne.s32.totalorder %s35, %s36
      %p47 = scmp.eq.s32.totalorder %s27, 0
      %p48 = por %p46, %p47
      %p49 = scmp.ne.s32.totalorder %s35, %s36
      %p50 = scmp.eq.s32.totalorder %s28, 1
      %p51 = por %p49, %p50
      %p53 = scmp.ne.s32.totalorder %s36, %s52
      %p54 = scmp.eq.s32.totalorder %s28, 0
      %p55 = por %p53, %p54
      %s57 = sadd.s32 %s56, 1
      %p60 = scmp.eq.s32.totalorder %s22, 1
      %p61 = scmp.ne.s32.totalorder %s56, %s58
      %p62 = scmp.eq.s32.totalorder %s22, 0
      %p63 = por %p61, %p62
      %p64 = scmp.ne.s32.totalorder %s56, %s58
      %p65 = scmp.eq.s32.totalorder %s27, 1
      %p66 = por %p64, %p65
      %p67 = scmp.ne.s32.totalorder %s58, %s59
      %p68 = scmp.eq.s32.totalorder %s27, 0
      %p69 = por %p67, %p68
      %p70 = scmp.ne.s32.totalorder %s58, %s59
      %p71 = scmp.eq.s32.totalorder %s28, 1
      %p72 = por %p70, %p71
      %p74 = scmp.ne.s32.totalorder %s59, %s73
      %p75 = scmp.eq.s32.totalorder %s28, 0
      %p76 = por %p74, %p75
      %s78 = sadd.s32 %s77, 1
      %p81 = scmp.eq.s32.totalorder %s22, 1
      %p82 = scmp.ne.s32.totalorder %s77, %s79
      %p83 = scmp.eq.s32.totalorder %s22, 0
      %p84 = por %p82, %p83
      %p85 = scmp.ne.s32.totalorder %s77, %s79
      %p86 = scmp.eq.s32.totalorder %s27, 1
      %p87 = por %p85, %p86
      %p88 = scmp.ne.s32.totalorder %s79, %s80
      %p89 = scmp.eq.s32.totalorder %s27, 0
      %p90 = por %p88, %p89
      %p91 = scmp.ne.s32.totalorder %s79, %s80
      %p92 = scmp.eq.s32.totalorder %s28, 1
      %p93 = por %p91, %p92
      %p95 = scmp.ne.s32.totalorder %s80, %s94
      %p96 = scmp.eq.s32.totalorder %s28, 0
      %p97 = por %p95, %p96
      %s99 = sadd.s32 %s98, 1
      %p102 = scmp.eq.s32.totalorder %s22, 1
      %p103 = scmp.ne.s32.totalorder %s98, %s100
      %p104 = scmp.eq.s32.totalorder %s22, 0
      %p105 = por %p103, %p104
      %p106 = scmp.ne.s32.totalorder %s98, %s100
      %p107 = scmp.eq.s32.totalorder %s27, 1
      %p108 = por %p106, %p107
      %p109 = scmp.ne.s32.totalorder %s100, %s101
      %p110 = scmp.eq.s32.totalorder %s27, 0
      %p111 = por %p109, %p110
      %p112 = scmp.ne.s32.totalorder %s100, %s101
      %p113 = scmp.eq.s32.totalorder %s28, 1
      %p114 = por %p112, %p113
      %p116 = scmp.ne.s32.totalorder %s101, %s115
      %p117 = scmp.eq.s32.totalorder %s28, 0
      %p118 = por %p116, %p117
      %s120 = sadd.s32 %s119, 1
      %p123 = scmp.eq.s32.totalorder %s22, 1
      %p124 = scmp.ne.s32.totalorder %s119, %s121
      %p125 = scmp.eq.s32.totalorder %s22, 0
      %p126 = por %p124, %p125
      %p127 = scmp.ne.s32.totalorder %s119, %s121
      %p128 = scmp.eq.s32.totalorder %s27, 1
      %p129 = por %p127, %p128
      %p130 = scmp.ne.s32.totalorder %s121, %s122
      %p131 = scmp.eq.s32.totalorder %s27, 0
      %p132 = por %p130, %p131
      %p133 = scmp.ne.s32.totalorder %s121, %s122
      %p134 = scmp.eq.s32.totalorder %s28, 1
      %p135 = por %p133, %p134
      %p137 = scmp.ne.s32.totalorder %s122, %s136
      %p138 = scmp.eq.s32.totalorder %s28, 0
      %p139 = por %p137, %p138
      %s141 = sadd.s32 %s140, 1
      %p144 = scmp.eq.s32.totalorder %s22, 1
      %p145 = scmp.ne.s32.totalorder %s140, %s142
      %p146 = scmp.eq.s32.totalorder %s22, 0
      %p147 = por %p145, %p146
      %p148 = scmp.ne.s32.totalorder %s140, %s142
      %p149 = scmp.eq.s32.totalorder %s27, 1
      %p150 = por %p148, %p149
      %p151 = scmp.ne.s32.totalorder %s142, %s143
      %p152 = scmp.eq.s32.totalorder %s27, 0
      %p153 = por %p151, %p152
      %p154 = scmp.ne.s32.totalorder %s142, %s143
      %p155 = scmp.eq.s32.totalorder %s28, 1
      %p156 = por %p154, %p155
      %p158 = scmp.ne.s32.totalorder %s143, %s157
      %p159 = scmp.eq.s32.totalorder %s28, 0
      %p160 = por %p158, %p159
      %s162 = sadd.s32 %s161, 1
      %p165 = scmp.eq.s32.totalorder %s22, 1
      %p166 = scmp.ne.s32.totalorder %s161, %s163
      %p167 = scmp.eq.s32.totalorder %s22, 0
      %p168 = por %p166, %p167
      %p169 = scmp.ne.s32.totalorder %s161, %s163
      %p170 = scmp.eq.s32.totalorder %s27, 1
      %p171 = por %p169, %p170
      %p172 = scmp.ne.s32.totalorder %s163, %s164
      %p173 = scmp.eq.s32.totalorder %s27, 0
      %p174 = por %p172, %p173
      %p175 = scmp.ne.s32.totalorder %s163, %s164
      %p176 = scmp.eq.s32.totalorder %s28, 1
      %p177 = por %p175, %p176
      %p179 = scmp.ne.s32.totalorder %s164, %s178
      %p180 = scmp.eq.s32.totalorder %s28, 0
      %p181 = por %p179, %p180
      %s182 = ssub.s32 %s22, %s29
      %p183 = scmp.eq.s32.totalorder %s182, 0
      %s185 = sadd.s32 %s184, 1
      %s186 = scalar_select %p183, %s184, %s185
      %p189 = pneg %p183
      %p190 = scmp.eq.s32.totalorder %s22, 1
      %p191 = por %p189, %p190
      %p192 = scmp.ne.s32.totalorder %s184, %s187
      %p193 = scmp.eq.s32.totalorder %s22, 0
      %p194 = por %p192, %p193
      %p195 = scmp.ne.s32.totalorder %s184, %s187
      %p196 = scmp.eq.s32.totalorder %s27, 1
      %p197 = por %p195, %p196
      %p198 = scmp.ne.s32.totalorder %s187, %s188
      %p199 = scmp.eq.s32.totalorder %s27, 0
      %p200 = por %p198, %p199
      %p201 = scmp.ne.s32.totalorder %s187, %s188
      %p202 = scmp.eq.s32.totalorder %s28, 1
      %p203 = por %p201, %p202
      %p205 = scmp.ne.s32.totalorder %s188, %s204
      %p206 = scmp.eq.s32.totalorder %s28, 0
      %p207 = por %p205, %p206
      %p208 = scmp.le.s32.totalorder 1, %s22
      %p209 = scmp.lt.s32.totalorder %s22, 3
      %p210 = pnand %p208, %p209
      %p211 = pneg %p210
      // Predicated region
      $region9: #{tpu_custom_call.1} parent=5 // pred_check
        _
      $region10: #{tpu_custom_call.1} parent=5 // pred_check_branch
        %213 = sbr.rel (%p210) target = $region12
      $region11: #{tpu_custom_call.1} parent=5 // pred_region
        %s214 = ssub.s32 %s22, 1
        // Predicated region
        $region13: #{tpu_custom_call.1} parent=11 // pred_check
          %p215 = pneg %p69
        $region14: #{tpu_custom_call.1} parent=11 // pred_check_branch
          %217 = sbr.rel (%p215) target = $region16
        $region15: #{tpu_custom_call.1} parent=11 // pred_region
          %s219 = ssub.s32 256, 256
          %220 = vsyncadd [#allocation10], %s219
          %s221 = sshll.u32 [#allocation9], 4
          %s222 = int_to_ptr.vmem [resolvable:$true] %s221
          %227 = dma.hbm_to_vmem [thread:$0]  %s1, 256, %s222, [#allocation10], 128, 128, 8
        $region16: #{tpu_custom_call.1} parent=11 // pred_fallthru
          _
        // Predicated region
        $region17: #{tpu_custom_call.1} parent=11 // pred_check
          %p228 = pneg %p90
        $region18: #{tpu_custom_call.1} parent=11 // pred_check_branch
          %230 = sbr.rel (%p228) target = $region20
        $region19: #{tpu_custom_call.1} parent=11 // pred_region
          %s232 = ssub.s32 128, 128
          %233 = vsyncadd [#allocation10], %s232
          %s235 = sshll.u32 [#allocation11], 4
          %s236 = int_to_ptr.vmem [resolvable:$true] %s235
          %238 = dma.hbm_to_vmem [thread:$0]  %s2, 128, %s236, [#allocation10]
        $region20: #{tpu_custom_call.1} parent=11 // pred_fallthru
          _
        // Predicated region
        $region21: #{tpu_custom_call.1} parent=11 // pred_check
          %p239 = pneg %p111
        $region22: #{tpu_custom_call.1} parent=11 // pred_check_branch
          %241 = sbr.rel (%p239) target = $region24
        $region23: #{tpu_custom_call.1} parent=11 // pred_region
          %s243 = ssub.s32 256, 256
          %244 = vsyncadd [#allocation13], %s243
          %s245 = sshll.u32 [#allocation12], 4
          %s246 = int_to_ptr.vmem [resolvable:$true] %s245
          %251 = dma.hbm_to_vmem [thread:$0]  %s3, 256, %s246, [#allocation13], 128, 128, 8
        $region24: #{tpu_custom_call.1} parent=11 // pred_fallthru
          _
        // Predicated region
        $region25: #{tpu_custom_call.1} parent=11 // pred_check
          %p252 = pneg %p132
        $region26: #{tpu_custom_call.1} parent=11 // pred_check_branch
          %254 = sbr.rel (%p252) target = $region28
        $region27: #{tpu_custom_call.1} parent=11 // pred_region
          %s256 = ssub.s32 256, 256
          %257 = vsyncadd [#allocation13], %s256
          %s258 = sshll.u32 [#allocation14], 4
          %s259 = int_to_ptr.vmem [resolvable:$true] %s258
          %264 = dma.hbm_to_vmem [thread:$0]  %s4, 256, %s259, [#allocation13], 128, 128, 8
        $region28: #{tpu_custom_call.1} parent=11 // pred_fallthru
          _
        // Predicated region
        $region29: #{tpu_custom_call.1} parent=11 // pred_check
          %p265 = pneg %p153
        $region30: #{tpu_custom_call.1} parent=11 // pred_check_branch
          %267 = sbr.rel (%p265) target = $region32
        $region31: #{tpu_custom_call.1} parent=11 // pred_region
          %s269 = ssub.s32 256, 256
          %270 = vsyncadd [#allocation16], %s269
          %s271 = sshll.u32 [#allocation15], 4
          %s272 = int_to_ptr.vmem [resolvable:$true] %s271
          %277 = dma.hbm_to_vmem [thread:$0]  %s5, 256, %s272, [#allocation16], 128, 128, 8
        $region32: #{tpu_custom_call.1} parent=11 // pred_fallthru
          _
        // Predicated region
        $region33: #{tpu_custom_call.1} parent=11 // pred_check
          %p278 = pneg %p174
        $region34: #{tpu_custom_call.1} parent=11 // pred_check_branch
          %280 = sbr.rel (%p278) target = $region36
        $region35: #{tpu_custom_call.1} parent=11 // pred_region
          %s282 = ssub.s32 256, 256
          %283 = vsyncadd [#allocation16], %s282
          %s284 = sshll.u32 [#allocation17], 4
          %s285 = int_to_ptr.vmem [resolvable:$true] %s284
          %290 = dma.hbm_to_vmem [thread:$0]  %s6, 256, %s285, [#allocation16], 128, 128, 8
        $region36: #{tpu_custom_call.1} parent=11 // pred_fallthru
          _
      $region12: #{tpu_custom_call.1} parent=5 // pred_fallthru
        _
      %p291 = scmp.lt.s32.totalorder %s22, 2
      // Predicated region
      $region37: #{tpu_custom_call.1} parent=5 // pred_check
        %p292 = pneg %p291
      $region38: #{tpu_custom_call.1} parent=5 // pred_check_branch
        %294 = sbr.rel (%p292) target = $region40
      $region39: #{tpu_custom_call.1} parent=5 // pred_region
        // Predicated region
        $region41: #{tpu_custom_call.1} parent=39 // pred_check
          %p295 = pneg %p42
        $region42: #{tpu_custom_call.1} parent=39 // pred_check_branch
          %297 = sbr.rel (%p295) target = $region44
        $region43: #{tpu_custom_call.1} parent=39 // pred_region
          %s298 = sand.u32 %s32, 1
          %s299 = scalar_lea.sflag [#allocation7], %s298
          %s300 = sand.u32 %s32, 1
          %s301 = smul.addr %s300, 32
          %s302 = scalar_lea.vmem [#allocation6], %s301
          %s304 = ssub.s32 512, 512
          %305 = vsyncadd %s299, %s304
          %s306 = smul.addr %s22, 4
          %s307 = smul.addr %s306, 128
          %s308 = scalar_lea.hbm %s0, %s307
          %s309 = sshll.u32 %s302, 4
          %s310 = int_to_ptr.vmem [resolvable:$true] %s309
          %315 = dma.hbm_to_vmem [thread:$0]  %s308, 512, %s310, %s299, 256, 256, 16
        $region44: #{tpu_custom_call.1} parent=39 // pred_fallthru
          _
      $region40: #{tpu_custom_call.1} parent=5 // pred_fallthru
        _
      %p316 = scmp.le.s32.totalorder 1, %s22
      %p317 = scmp.lt.s32.totalorder %s22, 3
      %p318 = pnand %p316, %p317
      %p319 = pneg %p318
      // Predicated region
      $region45: #{tpu_custom_call.1} parent=5 // pred_check
        _
      $region46: #{tpu_custom_call.1} parent=5 // pred_check_branch
        %321 = sbr.rel (%p318) target = $region48
      $region47: #{tpu_custom_call.1} parent=5 // pred_region
        %s322 = ssub.s32 %s22, 1
        %s323 = sand.u32 %s35, 1
        %s324 = scalar_lea.sflag [#allocation7], %s323
        %s325 = sand.u32 %s35, 1
        %s326 = smul.addr %s325, 32
        %s327 = scalar_lea.vmem [#allocation6], %s326
        // Predicated region
        $region49: #{tpu_custom_call.1} parent=47 // pred_check
          %p328 = pneg %p48
        $region50: #{tpu_custom_call.1} parent=47 // pred_check_branch
          %330 = sbr.rel (%p328) target = $region52
        $region51: #{tpu_custom_call.1} parent=47 // pred_region
          %331 = dma.done %s324, 512
        $region52: #{tpu_custom_call.1} parent=47 // pred_fallthru
          _
        // Predicated region
        $region53: #{tpu_custom_call.1} parent=47 // pred_check
          %p332 = pneg %p69
        $region54: #{tpu_custom_call.1} parent=47 // pred_check_branch
          %334 = sbr.rel (%p332) target = $region56
        $region55: #{tpu_custom_call.1} parent=47 // pred_region
          %335 = dma.done [#allocation10], 256
        $region56: #{tpu_custom_call.1} parent=47 // pred_fallthru
          _
        // Predicated region
        $region57: #{tpu_custom_call.1} parent=47 // pred_check
          %p336 = pneg %p90
        $region58: #{tpu_custom_call.1} parent=47 // pred_check_branch
          %338 = sbr.rel (%p336) target = $region60
        $region59: #{tpu_custom_call.1} parent=47 // pred_region
          %339 = dma.done [#allocation10], 128
        $region60: #{tpu_custom_call.1} parent=47 // pred_fallthru
          _
        // Predicated region
        $region61: #{tpu_custom_call.1} parent=47 // pred_check
          %p340 = pneg %p111
        $region62: #{tpu_custom_call.1} parent=47 // pred_check_branch
          %342 = sbr.rel (%p340) target = $region64
        $region63: #{tpu_custom_call.1} parent=47 // pred_region
          %343 = dma.done [#allocation13], 256
        $region64: #{tpu_custom_call.1} parent=47 // pred_fallthru
          _
        // Predicated region
        $region65: #{tpu_custom_call.1} parent=47 // pred_check
          %p344 = pneg %p132
        $region66: #{tpu_custom_call.1} parent=47 // pred_check_branch
          %346 = sbr.rel (%p344) target = $region68
        $region67: #{tpu_custom_call.1} parent=47 // pred_region
          %347 = dma.done [#allocation13], 256
        $region68: #{tpu_custom_call.1} parent=47 // pred_fallthru
          _
        // Predicated region
        $region69: #{tpu_custom_call.1} parent=47 // pred_check
          %p348 = pneg %p153
        $region70: #{tpu_custom_call.1} parent=47 // pred_check_branch
          %350 = sbr.rel (%p348) target = $region72
        $region71: #{tpu_custom_call.1} parent=47 // pred_region
          %351 = dma.done [#allocation16], 256
        $region72: #{tpu_custom_call.1} parent=47 // pred_fallthru
          _
        // Predicated region
        $region73: #{tpu_custom_call.1} parent=47 // pred_check
          %p352 = pneg %p174
        $region74: #{tpu_custom_call.1} parent=47 // pred_check_branch
          %354 = sbr.rel (%p352) target = $region76
        $region75: #{tpu_custom_call.1} parent=47 // pred_region
          %355 = dma.done [#allocation16], 256
        $region76: #{tpu_custom_call.1} parent=47 // pred_fallthru
          _
        %s356 = sand.u32 %s35, 1
        %s357 = scalar_lea.sflag [#allocation7], %s356
        %s358 = sand.u32 %s35, 1
        %s359 = smul.addr %s358, 32
        %s360 = scalar_lea.vmem [#allocation6], %s359
        %p361 = pneg %p48
        %p362 = pneg %p45
        %p363 = pneg %p69
        %p364 = pneg %p66
        %p365 = pneg %p90
        %p366 = pneg %p87
        %p367 = pneg %p111
        %p368 = pneg %p108
        %p369 = pneg %p132
        %p370 = pneg %p129
        %p371 = pneg %p153
        %p372 = pneg %p150
        %p373 = pneg %p174
        %p374 = pneg %p171
        %p375 = pneg %p200
        %p376 = pneg %p197
        %s377 = sand.u32 %s187, 1
        %s378 = scalar_lea.sflag [#allocation8], %s377
        %s379 = sand.u32 %s187, 1
        %s380 = smul.addr %s379, 16
        %s381 = scalar_lea.vmem [#allocation18], %s380
        %v383 = vlaneseq
        %v384 = vand.u32 %v383, 127
        %v385 = vadd.s32 %v384, 128
        %vm386 = vcmp.lt.s32.totalorder %v384, 0
        %v387 = vsub.s32 0, %v384
        %v388 = vsel %vm386, %v387, %v384
        %v389 = vshrl.u32 %v388, 4
        %v390 = vand.u32 %v388, 15
        %v391 = vsub.s32 0, %v390
        %v392 = vsel %vm386, %v391, %v390
        %vm393 = vcmp.lt.s32.totalorder %v385, 0
        %v394 = vsub.s32 0, %v385
        %v395 = vsel %vm393, %v394, %v385
        %v396 = vshrl.u32 %v395, 4
        %v397 = vand.u32 %v395, 15
        %v398 = vsub.s32 0, %v397
        %v399 = vsel %vm393, %v398, %v397
        %vm400 = vcmp.ne.s32.totalorder %v392, 0
        %vm401 = vcmp.ne.s32.totalorder %v399, 0
        %vm402 = vcmp.lt.s32.totalorder %v392, 0
        %vm403 = vcmp.lt.s32.totalorder %v399, 0
        %vm404 = vmand %vm402, %vm400
        %vm405 = vmand %vm403, %vm401
        %v406 = vadd.s32 %v392, 16
        %v407 = vadd.s32 %v399, 16
        %v408 = vsel %vm404, %v406, %v392
        %v409 = vsel %vm405, %v407, %v399
        %vm410 = vcmp.ge.s32.totalorder %v384, 16
        %vm411 = vcmp.ge.s32.totalorder %v385, 16
        %vm412 = vcmp.lt.s32.totalorder %v384, 240
        %vm413 = vcmp.lt.s32.totalorder %v385, 240
        %vm414 = vcmp.ge.s32.totalorder %v408, 1
        %vm415 = vcmp.ge.s32.totalorder %v409, 1
        %vm416 = vcmp.le.s32.totalorder %v408, 14
        %vm417 = vcmp.le.s32.totalorder %v409, 14
        %vm418 = vmand %vm410, %vm414
        %vm419 = vmand %vm411, %vm415
        %vm420 = vmand %vm410, %vm416
        %vm421 = vmand %vm411, %vm417
        %vm422 = vmand %vm412, %vm414
        %vm423 = vmand %vm413, %vm415
        %vm424 = vmand %vm412, %vm416
        %vm425 = vmand %vm413, %vm417
        %v426 = vld [vmem:[%s327] sm:$0xff]
        %v427 = vld [vmem:[%s327 + $0x8] sm:$0xff]
        %v428 = vld [vmem:[%s327 + $0x10] sm:$0xff]
        %v429 = vld [vmem:[%s327 + $0x18] sm:$0xff]
        %v430 = vld [vmem:[#allocation12] sm:$0xff]
        %v431 = vld [vmem:[#allocation12 + $0x8] sm:$0xff]
        %433 = vset.pattern.permute.xlu0 0
        %434 = vperm.xlu0 %433, %v430
        %v435 = vpop.permute.xlu0 %434
        %438 = vset.pattern.permute.xlu0 0
        %439 = vperm.xlu0 %438, %v431
        %v440 = vpop.permute.xlu0 %439
        %v442 = vmul.f32 %v426, %v435
        %v443 = vmul.f32 %v427, %v435
        %v444 = vmul.f32 %v428, %v440
        %v445 = vmul.f32 %v429, %v440
        %v446 = vld [vmem:[#allocation14] sm:$0xff]
        %v447 = vld [vmem:[#allocation14 + $0x8] sm:$0xff]
        %449 = vset.pattern.permute.xlu0 0
        %450 = vperm.xlu0 %449, %v446
        %v451 = vpop.permute.xlu0 %450
        %454 = vset.pattern.permute.xlu0 0
        %455 = vperm.xlu0 %454, %v447
        %v456 = vpop.permute.xlu0 %455
        %v458 = vadd.f32 %v442, %v451
        %v459 = vadd.f32 %v443, %v451
        %v460 = vadd.f32 %v444, %v456
        %v461 = vadd.f32 %v445, %v456
        %v462 = vmax.f32 %v458, 0.0
        %v463 = vmax.f32 %v459, 0.0
        %v464 = vmax.f32 %v460, 0.0
        %v465 = vmax.f32 %v461, 0.0
        %466 = vst [vmem:[#allocation2 + $0x8] sm:$0xff] %v462
        %467 = vst [vmem:[#allocation2 + $0x10] sm:$0xff] %v463
        %468 = vst [vmem:[#allocation2 + $0x28] sm:$0xff] %v464
        %469 = vst [vmem:[#allocation2 + $0x30] sm:$0xff] %v465
        %v470 = vld [vmem:[#allocation2] sm:$0xff]
        %v471 = vld [vmem:[#allocation2 + $0x8] sm:$0xff]
        %v472 = vld [vmem:[#allocation2 + $0x10] sm:$0xff]
        %v473 = vld [vmem:[#allocation2 + $0x20] sm:$0xff]
        %v474 = vld [vmem:[#allocation2 + $0x28] sm:$0xff]
        %v475 = vld [vmem:[#allocation2 + $0x30] sm:$0xff]
        %v476 = vsel %vm418, 1, 0
        %v477 = vsel %vm419, 1, 0
        %vm478 = vcmp.eq.s32.totalorder %v476, 1
        %vm479 = vcmp.eq.s32.totalorder %v477, 1
        %486 = vrot.lane.b32.xlu0 %v470, 17
        %v487 = vpop.permute.xlu0 %486
        %488 = vrot.lane.b32.xlu0 %v471, 17
        %v489 = vpop.permute.xlu0 %488
        %490 = vrot.lane.b32.xlu0 %v472, 17
        %v491 = vpop.permute.xlu0 %490
        %492 = vrot.lane.b32.xlu0 %v473, 17
        %v493 = vpop.permute.xlu0 %492
        %494 = vrot.lane.b32.xlu0 %v474, 17
        %v495 = vpop.permute.xlu0 %494
        %496 = vrot.lane.b32.xlu0 %v475, 17
        %v497 = vpop.permute.xlu0 %496
        %vm498 = vcmask 138240
        %v499 = vsel %vm498, %v487, %v489
        %v500 = vsel %vm498, %v489, %v491
        %v501 = vsel %vm498, %v493, %v495
        %v502 = vsel %vm498, %v495, %v497
        %v507 = vsel %vm478, %v499, 0.0
        %v508 = vsel %vm479, %v500, 0.0
        %v509 = vsel %vm478, %v501, 0.0
        %v510 = vsel %vm479, %v502, 0.0
        %v511 = vpack.c.bf16 %v509, %v507
        %v512 = vpack.c.bf16 %v510, %v508
        %513 = vst [vmem:[#allocation4] sm:$0xff] %v511
        %514 = vst [vmem:[#allocation4 + $0x8] sm:$0xff] %v512
        %v515 = vld [vmem:[#allocation2] sm:$0xff]
        %v516 = vld [vmem:[#allocation2 + $0x8] sm:$0xff]
        %v517 = vld [vmem:[#allocation2 + $0x10] sm:$0xff]
        %v518 = vld [vmem:[#allocation2 + $0x20] sm:$0xff]
        %v519 = vld [vmem:[#allocation2 + $0x28] sm:$0xff]
        %v520 = vld [vmem:[#allocation2 + $0x30] sm:$0xff]
        %v521 = vsel %vm410, 1, 0
        %v522 = vsel %vm411, 1, 0
        %vm523 = vcmp.eq.s32.totalorder %v521, 1
        %vm524 = vcmp.eq.s32.totalorder %v522, 1
        %531 = vrot.lane.b32.xlu0 %v515, 16
        %v532 = vpop.permute.xlu0 %531
        %533 = vrot.lane.b32.xlu0 %v516, 16
        %v534 = vpop.permute.xlu0 %533
        %535 = vrot.lane.b32.xlu0 %v517, 16
        %v536 = vpop.permute.xlu0 %535
        %537 = vrot.lane.b32.xlu0 %v518, 16
        %v538 = vpop.permute.xlu0 %537
        %539 = vrot.lane.b32.xlu0 %v519, 16
        %v540 = vpop.permute.xlu0 %539
        %541 = vrot.lane.b32.xlu0 %v520, 16
        %v542 = vpop.permute.xlu0 %541
        %vm543 = vcmask 130048
        %v544 = vsel %vm543, %v532, %v534
        %v545 = vsel %vm543, %v534, %v536
        %v546 = vsel %vm543, %v538, %v540
        %v547 = vsel %vm543, %v540, %v542
        %v552 = vsel %vm523, %v544, 0.0
        %v553 = vsel %vm524, %v545, 0.0
        %v554 = vsel %vm523, %v546, 0.0
        %v555 = vsel %vm524, %v547, 0.0
        %v556 = vpack.c.bf16 %v554, %v552
        %v557 = vpack.c.bf16 %v555, %v553
        %558 = vst [vmem:[#allocation4 + $0x10] sm:$0xff] %v556
        %559 = vst [vmem:[#allocation4 + $0x18] sm:$0xff] %v557
        %v560 = vld [vmem:[#allocation2] sm:$0xff]
        %v561 = vld [vmem:[#allocation2 + $0x8] sm:$0xff]
        %v562 = vld [vmem:[#allocation2 + $0x10] sm:$0xff]
        %v563 = vld [vmem:[#allocation2 + $0x20] sm:$0xff]
        %v564 = vld [vmem:[#allocation2 + $0x28] sm:$0xff]
        %v565 = vld [vmem:[#allocation2 + $0x30] sm:$0xff]
        %v566 = vsel %vm420, 1, 0
        %v567 = vsel %vm421, 1, 0
        %vm568 = vcmp.eq.s32.totalorder %v566, 1
        %vm569 = vcmp.eq.s32.totalorder %v567, 1
        %576 = vrot.lane.b32.xlu0 %v560, 15
        %v577 = vpop.permute.xlu0 %576
        %578 = vrot.lane.b32.xlu0 %v561, 15
        %v579 = vpop.permute.xlu0 %578
        %580 = vrot.lane.b32.xlu0 %v562, 15
        %v581 = vpop.permute.xlu0 %580
        %582 = vrot.lane.b32.xlu0 %v563, 15
        %v583 = vpop.permute.xlu0 %582
        %584 = vrot.lane.b32.xlu0 %v564, 15
        %v585 = vpop.permute.xlu0 %584
        %586 = vrot.lane.b32.xlu0 %v565, 15
        %v587 = vpop.permute.xlu0 %586
        %vm588 = vcmask 121856
        %v589 = vsel %vm588, %v577, %v579
        %v590 = vsel %vm588, %v579, %v581
        %v591 = vsel %vm588, %v583, %v585
        %v592 = vsel %vm588, %v585, %v587
        %v597 = vsel %vm568, %v589, 0.0
        %v598 = vsel %vm569, %v590, 0.0
        %v599 = vsel %vm568, %v591, 0.0
        %v600 = vsel %vm569, %v592, 0.0
        %v601 = vpack.c.bf16 %v599, %v597
        %v602 = vpack.c.bf16 %v600, %v598
        %603 = vst [vmem:[#allocation4 + $0x20] sm:$0xff] %v601
        %604 = vst [vmem:[#allocation4 + $0x28] sm:$0xff] %v602
        %v605 = vld [vmem:[#allocation2] sm:$0xff]
        %v606 = vld [vmem:[#allocation2 + $0x8] sm:$0xff]
        %v607 = vld [vmem:[#allocation2 + $0x10] sm:$0xff]
        %v608 = vld [vmem:[#allocation2 + $0x20] sm:$0xff]
        %v609 = vld [vmem:[#allocation2 + $0x28] sm:$0xff]
        %v610 = vld [vmem:[#allocation2 + $0x30] sm:$0xff]
        %v611 = vsel %vm414, 1, 0
        %v612 = vsel %vm415, 1, 0
        %vm613 = vcmp.eq.s32.totalorder %v611, 1
        %vm614 = vcmp.eq.s32.totalorder %v612, 1
        %621 = vrot.lane.b32.xlu0 %v605, 1
        %v622 = vpop.permute.xlu0 %621
        %623 = vrot.lane.b32.xlu0 %v606, 1
        %v624 = vpop.permute.xlu0 %623
        %625 = vrot.lane.b32.xlu0 %v607, 1
        %v626 = vpop.permute.xlu0 %625
        %627 = vrot.lane.b32.xlu0 %v608, 1
        %v628 = vpop.permute.xlu0 %627
        %629 = vrot.lane.b32.xlu0 %v609, 1
        %v630 = vpop.permute.xlu0 %629
        %631 = vrot.lane.b32.xlu0 %v610, 1
        %v632 = vpop.permute.xlu0 %631
        %vm633 = vcmask 7168
        %v634 = vsel %vm633, %v622, %v624
        %v635 = vsel %vm633, %v624, %v626
        %v636 = vsel %vm633, %v628, %v630
        %v637 = vsel %vm633, %v630, %v632
        %v642 = vsel %vm613, %v634, 0.0
        %v643 = vsel %vm614, %v635, 0.0
        %v644 = vsel %vm613, %v636, 0.0
        %v645 = vsel %vm614, %v637, 0.0
        %v646 = vpack.c.bf16 %v644, %v642
        %v647 = vpack.c.bf16 %v645, %v643
        %648 = vst [vmem:[#allocation4 + $0x30] sm:$0xff] %v646
        %649 = vst [vmem:[#allocation4 + $0x38] sm:$0xff] %v647
        %v650 = vld [vmem:[#allocation2 + $0x8] sm:$0xff]
        %v651 = vld [vmem:[#allocation2 + $0x10] sm:$0xff]
        %v652 = vld [vmem:[#allocation2 + $0x28] sm:$0xff]
        %v653 = vld [vmem:[#allocation2 + $0x30] sm:$0xff]
        %v654 = vpack.c.bf16 %v652, %v650
        %v655 = vpack.c.bf16 %v653, %v651
        %656 = vst [vmem:[#allocation4 + $0x40] sm:$0xff] %v654
        %657 = vst [vmem:[#allocation4 + $0x48] sm:$0xff] %v655
        %v658 = vld [vmem:[#allocation2 + $0x8] sm:$0xff]
        %v659 = vld [vmem:[#allocation2 + $0x10] sm:$0xff]
        %v660 = vld [vmem:[#allocation2 + $0x18] sm:$0xff]
        %v661 = vld [vmem:[#allocation2 + $0x28] sm:$0xff]
        %v662 = vld [vmem:[#allocation2 + $0x30] sm:$0xff]
        %v663 = vld [vmem:[#allocation2 + $0x38] sm:$0xff]
        %v664 = vsel %vm416, 1, 0
        %v665 = vsel %vm417, 1, 0
        %vm666 = vcmp.eq.s32.totalorder %v664, 1
        %vm667 = vcmp.eq.s32.totalorder %v665, 1
        %674 = vrot.lane.b32.xlu0 %v658, 127
        %v675 = vpop.permute.xlu0 %674
        %676 = vrot.lane.b32.xlu0 %v659, 127
        %v677 = vpop.permute.xlu0 %676
        %678 = vrot.lane.b32.xlu0 %v660, 127
        %v679 = vpop.permute.xlu0 %678
        %680 = vrot.lane.b32.xlu0 %v661, 127
        %v681 = vpop.permute.xlu0 %680
        %682 = vrot.lane.b32.xlu0 %v662, 127
        %v683 = vpop.permute.xlu0 %682
        %684 = vrot.lane.b32.xlu0 %v663, 127
        %v685 = vpop.permute.xlu0 %684
        %vm686 = vcmask 1039360
        %v687 = vsel %vm686, %v675, %v677
        %v688 = vsel %vm686, %v677, %v679
        %v689 = vsel %vm686, %v681, %v683
        %v690 = vsel %vm686, %v683, %v685
        %v695 = vsel %vm666, %v687, 0.0
        %v696 = vsel %vm667, %v688, 0.0
        %v697 = vsel %vm666, %v689, 0.0
        %v698 = vsel %vm667, %v690, 0.0
        %v699 = vpack.c.bf16 %v697, %v695
        %v700 = vpack.c.bf16 %v698, %v696
        %701 = vst [vmem:[#allocation4 + $0x50] sm:$0xff] %v699
        %702 = vst [vmem:[#allocation4 + $0x58] sm:$0xff] %v700
        %v703 = vld [vmem:[#allocation2 + $0x8] sm:$0xff]
        %v704 = vld [vmem:[#allocation2 + $0x10] sm:$0xff]
        %v705 = vld [vmem:[#allocation2 + $0x18] sm:$0xff]
        %v706 = vld [vmem:[#allocation2 + $0x28] sm:$0xff]
        %v707 = vld [vmem:[#allocation2 + $0x30] sm:$0xff]
        %v708 = vld [vmem:[#allocation2 + $0x38] sm:$0xff]
        %v709 = vsel %vm422, 1, 0
        %v710 = vsel %vm423, 1, 0
        %vm711 = vcmp.eq.s32.totalorder %v709, 1
        %vm712 = vcmp.eq.s32.totalorder %v710, 1
        %719 = vrot.lane.b32.xlu0 %v703, 113
        %v720 = vpop.permute.xlu0 %719
        %721 = vrot.lane.b32.xlu0 %v704, 113
        %v722 = vpop.permute.xlu0 %721
        %723 = vrot.lane.b32.xlu0 %v705, 113
        %v724 = vpop.permute.xlu0 %723
        %725 = vrot.lane.b32.xlu0 %v706, 113
        %v726 = vpop.permute.xlu0 %725
        %727 = vrot.lane.b32.xlu0 %v707, 113
        %v728 = vpop.permute.xlu0 %727
        %729 = vrot.lane.b32.xlu0 %v708, 113
        %v730 = vpop.permute.xlu0 %729
        %vm731 = vcmask 924672
        %v732 = vsel %vm731, %v720, %v722
        %v733 = vsel %vm731, %v722, %v724
        %v734 = vsel %vm731, %v726, %v728
        %v735 = vsel %vm731, %v728, %v730
        %v740 = vsel %vm711, %v732, 0.0
        %v741 = vsel %vm712, %v733, 0.0
        %v742 = vsel %vm711, %v734, 0.0
        %v743 = vsel %vm712, %v735, 0.0
        %v744 = vpack.c.bf16 %v742, %v740
        %v745 = vpack.c.bf16 %v743, %v741
        %746 = vst [vmem:[#allocation4 + $0x60] sm:$0xff] %v744
        %747 = vst [vmem:[#allocation4 + $0x68] sm:$0xff] %v745
        %v748 = vld [vmem:[#allocation2 + $0x8] sm:$0xff]
        %v749 = vld [vmem:[#allocation2 + $0x10] sm:$0xff]
        %v750 = vld [vmem:[#allocation2 + $0x18] sm:$0xff]
        %v751 = vld [vmem:[#allocation2 + $0x28] sm:$0xff]
        %v752 = vld [vmem:[#allocation2 + $0x30] sm:$0xff]
        %v753 = vld [vmem:[#allocation2 + $0x38] sm:$0xff]
        %v754 = vsel %vm412, 1, 0
        %v755 = vsel %vm413, 1, 0
        %vm756 = vcmp.eq.s32.totalorder %v754, 1
        %vm757 = vcmp.eq.s32.totalorder %v755, 1
        %764 = vrot.lane.b32.xlu0 %v748, 112
        %v765 = vpop.permute.xlu0 %764
        %766 = vrot.lane.b32.xlu0 %v749, 112
        %v767 = vpop.permute.xlu0 %766
        %768 = vrot.lane.b32.xlu0 %v750, 112
        %v769 = vpop.permute.xlu0 %768
        %770 = vrot.lane.b32.xlu0 %v751, 112
        %v771 = vpop.permute.xlu0 %770
        %772 = vrot.lane.b32.xlu0 %v752, 112
        %v773 = vpop.permute.xlu0 %772
        %774 = vrot.lane.b32.xlu0 %v753, 112
        %v775 = vpop.permute.xlu0 %774
        %vm776 = vcmask 916480
        %v777 = vsel %vm776, %v765, %v767
        %v778 = vsel %vm776, %v767, %v769
        %v779 = vsel %vm776, %v771, %v773
        %v780 = vsel %vm776, %v773, %v775
        %v785 = vsel %vm756, %v777, 0.0
        %v786 = vsel %vm757, %v778, 0.0
        %v787 = vsel %vm756, %v779, 0.0
        %v788 = vsel %vm757, %v780, 0.0
        %v789 = vpack.c.bf16 %v787, %v785
        %v790 = vpack.c.bf16 %v788, %v786
        %791 = vst [vmem:[#allocation4 + $0x70] sm:$0xff] %v789
        %792 = vst [vmem:[#allocation4 + $0x78] sm:$0xff] %v790
        %v793 = vld [vmem:[#allocation2 + $0x8] sm:$0xff]
        %v794 = vld [vmem:[#allocation2 + $0x10] sm:$0xff]
        %v795 = vld [vmem:[#allocation2 + $0x18] sm:$0xff]
        %v796 = vld [vmem:[#allocation2 + $0x28] sm:$0xff]
        %v797 = vld [vmem:[#allocation2 + $0x30] sm:$0xff]
        %v798 = vld [vmem:[#allocation2 + $0x38] sm:$0xff]
        %v799 = vsel %vm424, 1, 0
        %v800 = vsel %vm425, 1, 0
        %vm801 = vcmp.eq.s32.totalorder %v799, 1
        %vm802 = vcmp.eq.s32.totalorder %v800, 1
        %809 = vrot.lane.b32.xlu0 %v793, 111
        %v810 = vpop.permute.xlu0 %809
        %811 = vrot.lane.b32.xlu0 %v794, 111
        %v812 = vpop.permute.xlu0 %811
        %813 = vrot.lane.b32.xlu0 %v795, 111
        %v814 = vpop.permute.xlu0 %813
        %815 = vrot.lane.b32.xlu0 %v796, 111
        %v816 = vpop.permute.xlu0 %815
        %817 = vrot.lane.b32.xlu0 %v797, 111
        %v818 = vpop.permute.xlu0 %817
        %819 = vrot.lane.b32.xlu0 %v798, 111
        %v820 = vpop.permute.xlu0 %819
        %vm821 = vcmask 908288
        %v822 = vsel %vm821, %v810, %v812
        %v823 = vsel %vm821, %v812, %v814
        %v824 = vsel %vm821, %v816, %v818
        %v825 = vsel %vm821, %v818, %v820
        %v830 = vsel %vm801, %v822, 0.0
        %v831 = vsel %vm802, %v823, 0.0
        %v832 = vsel %vm801, %v824, 0.0
        %v833 = vsel %vm802, %v825, 0.0
        %v834 = vpack.c.bf16 %v832, %v830
        %v835 = vpack.c.bf16 %v833, %v831
        %836 = vst [vmem:[#allocation4 + $0x80] sm:$0xff] %v834
        %837 = vst [vmem:[#allocation4 + $0x88] sm:$0xff] %v835
        %v838 = vld [vmem:[#allocation9] sm:$0xff]
        %v839 = vld [vmem:[#allocation9 + $0x8] sm:$0xff]
        %v840 = vld [vmem:[#allocation4] sm:$0xff]
        %v841 = vld [vmem:[#allocation4 + $0x8] sm:$0xff]
        %v842 = vld [vmem:[#allocation4 + $0x10] sm:$0xff]
        %v843 = vld [vmem:[#allocation4 + $0x18] sm:$0xff]
        %v844 = vld [vmem:[#allocation4 + $0x20] sm:$0xff]
        %v845 = vld [vmem:[#allocation4 + $0x28] sm:$0xff]
        %v846 = vld [vmem:[#allocation4 + $0x30] sm:$0xff]
        %v847 = vld [vmem:[#allocation4 + $0x38] sm:$0xff]
        %v848 = vld [vmem:[#allocation4 + $0x40] sm:$0xff]
        %v849 = vld [vmem:[#allocation4 + $0x48] sm:$0xff]
        %v850 = vld [vmem:[#allocation4 + $0x50] sm:$0xff]
        %v851 = vld [vmem:[#allocation4 + $0x58] sm:$0xff]
        %v852 = vld [vmem:[#allocation4 + $0x60] sm:$0xff]
        %v853 = vld [vmem:[#allocation4 + $0x68] sm:$0xff]
        %v854 = vld [vmem:[#allocation4 + $0x70] sm:$0xff]
        %v855 = vld [vmem:[#allocation4 + $0x78] sm:$0xff]
        %v856 = vld [vmem:[#allocation4 + $0x80] sm:$0xff]
        %v857 = vld [vmem:[#allocation4 + $0x88] sm:$0xff]
        %v860 = vunpack.c.l.b16 %v838
        %v861 = vunpack.c.h.b16 %v838
        %v862 = vunpack.c.l.b16 %v839
        %v863 = vunpack.c.h.b16 %v839
        %v864 = vpack.c.b16 %v862, %v860
        %v865 = vpack.c.b16 %v863, %v861
        %v868 = vsel %vm543, %v865, 0
        %870 = vmatprep.subr.bf16.mxu0 %v841
        %871 = vmatpush1.bf16.msra.mxu0 %v840
        %872 = vmatprep.subr.bf16.mxu0 %v843
        %873 = vmatpush1.bf16.msra.mxu0 %v842
        %874 = vmatprep.subr.bf16.mxu0 %v845
        %875 = vmatpush1.bf16.msra.mxu0 %v844
        %876 = vmatprep.subr.bf16.mxu0 %v847
        %877 = vmatpush1.bf16.msra.mxu0 %v846
        %878 = vmatprep.subr.bf16.mxu0 %v849
        %879 = vmatpush1.bf16.msra.mxu0 %v848
        %880 = vmatprep.subr.bf16.mxu0 %v851
        %881 = vmatpush1.bf16.msra.mxu0 %v850
        %882 = vmatprep.subr.bf16.mxu0 %v853
        %883 = vmatpush1.bf16.msra.mxu0 %v852
        %884 = vmatprep.subr.bf16.mxu0 %v855
        %885 = vmatpush1.bf16.msra.mxu0 %v854
        %886 = vmatprep.subr.bf16.mxu0 %v857
        %887 = vmatpush1.bf16.msra.mxu0 %v856
        %888 = vmatprep.subr.bf16.mxu0 0
        %889 = vmatpush1.bf16.msra.mxu0 0
        %890 = vmatprep.subr.bf16.mxu0 0
        %891 = vmatpush1.bf16.msra.mxu0 0
        %892 = vmatprep.subr.bf16.mxu0 0
        %893 = vmatpush1.bf16.msra.mxu0 0
        %894 = vmatprep.subr.bf16.mxu0 0
        %895 = vmatpush1.bf16.msra.mxu0 0
        %896 = vmatprep.subr.bf16.mxu0 0
        %897 = vmatpush1.bf16.msra.mxu0 0
        %898 = vmatprep.subr.bf16.mxu0 0
        %899 = vmatpush1.bf16.msra.mxu0 0
        %900 = vmatprep.subr.bf16.mxu0 0
        %901 = vmatpush1.bf16.msra.mxu0 0
        %902 = vmatprep.mubr.bf16.mxu0 %v868
        %903 = vmatmul.mubr.bf16.gmra.mrb[0].mxu0 %v864
        %v904 = vpop.f32.mrb[0].mxu0
        %v905 = vadd.f32 0.0, %v904
        %v906 = vpop.f32.mrb[0].mxu0
        %v907 = vadd.f32 0.0, %v906
        %v908 = vpop.f32.mrb[0].mxu0
        %v909 = vadd.f32 0.0, %v908
        %v910 = vpop.f32.mrb[0].mxu0
        %v911 = vadd.f32 0.0, %v910
        %912 = vdwg.mxu0
        %v913 = vld [vmem:[#allocation15] sm:$0xff]
        %v914 = vld [vmem:[#allocation15 + $0x8] sm:$0xff]
        %916 = vset.pattern.permute.xlu0 0
        %917 = vperm.xlu0 %916, %v913
        %v918 = vpop.permute.xlu0 %917
        %921 = vset.pattern.permute.xlu0 0
        %922 = vperm.xlu0 %921, %v914
        %v923 = vpop.permute.xlu0 %922
        %v925 = vmul.f32 %v905, %v918
        %v926 = vmul.f32 %v907, %v918
        %v927 = vmul.f32 %v909, %v923
        %v928 = vmul.f32 %v911, %v923
        %v929 = vld [vmem:[#allocation17] sm:$0xff]
        %v930 = vld [vmem:[#allocation17 + $0x8] sm:$0xff]
        %932 = vset.pattern.permute.xlu0 0
        %933 = vperm.xlu0 %932, %v929
        %v934 = vpop.permute.xlu0 %933
        %937 = vset.pattern.permute.xlu0 0
        %938 = vperm.xlu0 %937, %v930
        %v939 = vpop.permute.xlu0 %938
        %v941 = vadd.f32 %v925, %v934
        %v942 = vadd.f32 %v926, %v934
        %v943 = vadd.f32 %v927, %v939
        %v944 = vadd.f32 %v928, %v939
        %v945 = vmax.f32 %v941, 0.0
        %v946 = vmax.f32 %v942, 0.0
        %v947 = vmax.f32 %v943, 0.0
        %v948 = vmax.f32 %v944, 0.0
        %949 = vst [vmem:[#allocation3 + $0x8] sm:$0xff] %v945
        %950 = vst [vmem:[#allocation3 + $0x10] sm:$0xff] %v946
        %951 = vst [vmem:[#allocation3 + $0x28] sm:$0xff] %v947
        %952 = vst [vmem:[#allocation3 + $0x30] sm:$0xff] %v948
        %v953 = vld [vmem:[#allocation3] sm:$0xff]
        %v954 = vld [vmem:[#allocation3 + $0x8] sm:$0xff]
        %v955 = vld [vmem:[#allocation3 + $0x10] sm:$0xff]
        %v956 = vld [vmem:[#allocation3 + $0x20] sm:$0xff]
        %v957 = vld [vmem:[#allocation3 + $0x28] sm:$0xff]
        %v958 = vld [vmem:[#allocation3 + $0x30] sm:$0xff]
        %965 = vrot.lane.b32.xlu0 %v953, 17
        %v966 = vpop.permute.xlu0 %965
        %967 = vrot.lane.b32.xlu0 %v954, 17
        %v968 = vpop.permute.xlu0 %967
        %969 = vrot.lane.b32.xlu0 %v955, 17
        %v970 = vpop.permute.xlu0 %969
        %971 = vrot.lane.b32.xlu0 %v956, 17
        %v972 = vpop.permute.xlu0 %971
        %973 = vrot.lane.b32.xlu0 %v957, 17
        %v974 = vpop.permute.xlu0 %973
        %975 = vrot.lane.b32.xlu0 %v958, 17
        %v976 = vpop.permute.xlu0 %975
        %v977 = vsel %vm498, %v966, %v968
        %v978 = vsel %vm498, %v968, %v970
        %v979 = vsel %vm498, %v972, %v974
        %v980 = vsel %vm498, %v974, %v976
        %v985 = vsel %vm478, %v977, 0.0
        %v986 = vsel %vm479, %v978, 0.0
        %v987 = vsel %vm478, %v979, 0.0
        %v988 = vsel %vm479, %v980, 0.0
        %v989 = vpack.c.bf16 %v987, %v985
        %v990 = vpack.c.bf16 %v988, %v986
        %991 = vst [vmem:[#allocation5] sm:$0xff] %v989
        %992 = vst [vmem:[#allocation5 + $0x8] sm:$0xff] %v990
        %v993 = vld [vmem:[#allocation3] sm:$0xff]
        %v994 = vld [vmem:[#allocation3 + $0x8] sm:$0xff]
        %v995 = vld [vmem:[#allocation3 + $0x10] sm:$0xff]
        %v996 = vld [vmem:[#allocation3 + $0x20] sm:$0xff]
        %v997 = vld [vmem:[#allocation3 + $0x28] sm:$0xff]
        %v998 = vld [vmem:[#allocation3 + $0x30] sm:$0xff]
        %1005 = vrot.lane.b32.xlu0 %v993, 16
        %v1006 = vpop.permute.xlu0 %1005
        %1007 = vrot.lane.b32.xlu0 %v994, 16
        %v1008 = vpop.permute.xlu0 %1007
        %1009 = vrot.lane.b32.xlu0 %v995, 16
        %v1010 = vpop.permute.xlu0 %1009
        %1011 = vrot.lane.b32.xlu0 %v996, 16
        %v1012 = vpop.permute.xlu0 %1011
        %1013 = vrot.lane.b32.xlu0 %v997, 16
        %v1014 = vpop.permute.xlu0 %1013
        %1015 = vrot.lane.b32.xlu0 %v998, 16
        %v1016 = vpop.permute.xlu0 %1015
        %v1017 = vsel %vm543, %v1006, %v1008
        %v1018 = vsel %vm543, %v1008, %v1010
        %v1019 = vsel %vm543, %v1012, %v1014
        %v1020 = vsel %vm543, %v1014, %v1016
        %v1025 = vsel %vm523, %v1017, 0.0
        %v1026 = vsel %vm524, %v1018, 0.0
        %v1027 = vsel %vm523, %v1019, 0.0
        %v1028 = vsel %vm524, %v1020, 0.0
        %v1029 = vpack.c.bf16 %v1027, %v1025
        %v1030 = vpack.c.bf16 %v1028, %v1026
        %1031 = vst [vmem:[#allocation5 + $0x10] sm:$0xff] %v1029
        %1032 = vst [vmem:[#allocation5 + $0x18] sm:$0xff] %v1030
        %v1033 = vld [vmem:[#allocation3] sm:$0xff]
        %v1034 = vld [vmem:[#allocation3 + $0x8] sm:$0xff]
        %v1035 = vld [vmem:[#allocation3 + $0x10] sm:$0xff]
        %v1036 = vld [vmem:[#allocation3 + $0x20] sm:$0xff]
        %v1037 = vld [vmem:[#allocation3 + $0x28] sm:$0xff]
        %v1038 = vld [vmem:[#allocation3 + $0x30] sm:$0xff]
        %1045 = vrot.lane.b32.xlu0 %v1033, 15
        %v1046 = vpop.permute.xlu0 %1045
        %1047 = vrot.lane.b32.xlu0 %v1034, 15
        %v1048 = vpop.permute.xlu0 %1047
        %1049 = vrot.lane.b32.xlu0 %v1035, 15
        %v1050 = vpop.permute.xlu0 %1049
        %1051 = vrot.lane.b32.xlu0 %v1036, 15
        %v1052 = vpop.permute.xlu0 %1051
        %1053 = vrot.lane.b32.xlu0 %v1037, 15
        %v1054 = vpop.permute.xlu0 %1053
        %1055 = vrot.lane.b32.xlu0 %v1038, 15
        %v1056 = vpop.permute.xlu0 %1055
        %v1057 = vsel %vm588, %v1046, %v1048
        %v1058 = vsel %vm588, %v1048, %v1050
        %v1059 = vsel %vm588, %v1052, %v1054
        %v1060 = vsel %vm588, %v1054, %v1056
        %v1065 = vsel %vm568, %v1057, 0.0
        %v1066 = vsel %vm569, %v1058, 0.0
        %v1067 = vsel %vm568, %v1059, 0.0
        %v1068 = vsel %vm569, %v1060, 0.0
        %v1069 = vpack.c.bf16 %v1067, %v1065
        %v1070 = vpack.c.bf16 %v1068, %v1066
        %1071 = vst [vmem:[#allocation5 + $0x20] sm:$0xff] %v1069
        %1072 = vst [vmem:[#allocation5 + $0x28] sm:$0xff] %v1070
        %v1073 = vld [vmem:[#allocation3] sm:$0xff]
        %v1074 = vld [vmem:[#allocation3 + $0x8] sm:$0xff]
        %v1075 = vld [vmem:[#allocation3 + $0x10] sm:$0xff]
        %v1076 = vld [vmem:[#allocation3 + $0x20] sm:$0xff]
        %v1077 = vld [vmem:[#allocation3 + $0x28] sm:$0xff]
        %v1078 = vld [vmem:[#allocation3 + $0x30] sm:$0xff]
        %1085 = vrot.lane.b32.xlu0 %v1073, 1
        %v1086 = vpop.permute.xlu0 %1085
        %1087 = vrot.lane.b32.xlu0 %v1074, 1
        %v1088 = vpop.permute.xlu0 %1087
        %1089 = vrot.lane.b32.xlu0 %v1075, 1
        %v1090 = vpop.permute.xlu0 %1089
        %1091 = vrot.lane.b32.xlu0 %v1076, 1
        %v1092 = vpop.permute.xlu0 %1091
        %1093 = vrot.lane.b32.xlu0 %v1077, 1
        %v1094 = vpop.permute.xlu0 %1093
        %1095 = vrot.lane.b32.xlu0 %v1078, 1
        %v1096 = vpop.permute.xlu0 %1095
        %v1097 = vsel %vm633, %v1086, %v1088
        %v1098 = vsel %vm633, %v1088, %v1090
        %v1099 = vsel %vm633, %v1092, %v1094
        %v1100 = vsel %vm633, %v1094, %v1096
        %v1105 = vsel %vm613, %v1097, 0.0
        %v1106 = vsel %vm614, %v1098, 0.0
        %v1107 = vsel %vm613, %v1099, 0.0
        %v1108 = vsel %vm614, %v1100, 0.0
        %v1109 = vpack.c.bf16 %v1107, %v1105
        %v1110 = vpack.c.bf16 %v1108, %v1106
        %1111 = vst [vmem:[#allocation5 + $0x30] sm:$0xff] %v1109
        %1112 = vst [vmem:[#allocation5 + $0x38] sm:$0xff] %v1110
        %v1113 = vld [vmem:[#allocation3 + $0x8] sm:$0xff]
        %v1114 = vld [vmem:[#allocation3 + $0x10] sm:$0xff]
        %v1115 = vld [vmem:[#allocation3 + $0x28] sm:$0xff]
        %v1116 = vld [vmem:[#allocation3 + $0x30] sm:$0xff]
        %v1117 = vpack.c.bf16 %v1115, %v1113
        %v1118 = vpack.c.bf16 %v1116, %v1114
        %1119 = vst [vmem:[#allocation5 + $0x40] sm:$0xff] %v1117
        %1120 = vst [vmem:[#allocation5 + $0x48] sm:$0xff] %v1118
        %v1121 = vld [vmem:[#allocation3 + $0x8] sm:$0xff]
        %v1122 = vld [vmem:[#allocation3 + $0x10] sm:$0xff]
        %v1123 = vld [vmem:[#allocation3 + $0x18] sm:$0xff]
        %v1124 = vld [vmem:[#allocation3 + $0x28] sm:$0xff]
        %v1125 = vld [vmem:[#allocation3 + $0x30] sm:$0xff]
        %v1126 = vld [vmem:[#allocation3 + $0x38] sm:$0xff]
        %1133 = vrot.lane.b32.xlu0 %v1121, 127
        %v1134 = vpop.permute.xlu0 %1133
        %1135 = vrot.lane.b32.xlu0 %v1122, 127
        %v1136 = vpop.permute.xlu0 %1135
        %1137 = vrot.lane.b32.xlu0 %v1123, 127
        %v1138 = vpop.permute.xlu0 %1137
        %1139 = vrot.lane.b32.xlu0 %v1124, 127
        %v1140 = vpop.permute.xlu0 %1139
        %1141 = vrot.lane.b32.xlu0 %v1125, 127
        %v1142 = vpop.permute.xlu0 %1141
        %1143 = vrot.lane.b32.xlu0 %v1126, 127
        %v1144 = vpop.permute.xlu0 %1143
        %v1145 = vsel %vm686, %v1134, %v1136
        %v1146 = vsel %vm686, %v1136, %v1138
        %v1147 = vsel %vm686, %v1140, %v1142
        %v1148 = vsel %vm686, %v1142, %v1144
        %v1153 = vsel %vm666, %v1145, 0.0
        %v1154 = vsel %vm667, %v1146, 0.0
        %v1155 = vsel %vm666, %v1147, 0.0
        %v1156 = vsel %vm667, %v1148, 0.0
        %v1157 = vpack.c.bf16 %v1155, %v1153
        %v1158 = vpack.c.bf16 %v1156, %v1154
        %1159 = vst [vmem:[#allocation5 + $0x50] sm:$0xff] %v1157
        %1160 = vst [vmem:[#allocation5 + $0x58] sm:$0xff] %v1158
        %v1161 = vld [vmem:[#allocation3 + $0x8] sm:$0xff]
        %v1162 = vld [vmem:[#allocation3 + $0x10] sm:$0xff]
        %v1163 = vld [vmem:[#allocation3 + $0x18] sm:$0xff]
        %v1164 = vld [vmem:[#allocation3 + $0x28] sm:$0xff]
        %v1165 = vld [vmem:[#allocation3 + $0x30] sm:$0xff]
        %v1166 = vld [vmem:[#allocation3 + $0x38] sm:$0xff]
        %1173 = vrot.lane.b32.xlu0 %v1161, 113
        %v1174 = vpop.permute.xlu0 %1173
        %1175 = vrot.lane.b32.xlu0 %v1162, 113
        %v1176 = vpop.permute.xlu0 %1175
        %1177 = vrot.lane.b32.xlu0 %v1163, 113
        %v1178 = vpop.permute.xlu0 %1177
        %1179 = vrot.lane.b32.xlu0 %v1164, 113
        %v1180 = vpop.permute.xlu0 %1179
        %1181 = vrot.lane.b32.xlu0 %v1165, 113
        %v1182 = vpop.permute.xlu0 %1181
        %1183 = vrot.lane.b32.xlu0 %v1166, 113
        %v1184 = vpop.permute.xlu0 %1183
        %v1185 = vsel %vm731, %v1174, %v1176
        %v1186 = vsel %vm731, %v1176, %v1178
        %v1187 = vsel %vm731, %v1180, %v1182
        %v1188 = vsel %vm731, %v1182, %v1184
        %v1193 = vsel %vm711, %v1185, 0.0
        %v1194 = vsel %vm712, %v1186, 0.0
        %v1195 = vsel %vm711, %v1187, 0.0
        %v1196 = vsel %vm712, %v1188, 0.0
        %v1197 = vpack.c.bf16 %v1195, %v1193
        %v1198 = vpack.c.bf16 %v1196, %v1194
        %1199 = vst [vmem:[#allocation5 + $0x60] sm:$0xff] %v1197
        %1200 = vst [vmem:[#allocation5 + $0x68] sm:$0xff] %v1198
        %v1201 = vld [vmem:[#allocation3 + $0x8] sm:$0xff]
        %v1202 = vld [vmem:[#allocation3 + $0x10] sm:$0xff]
        %v1203 = vld [vmem:[#allocation3 + $0x18] sm:$0xff]
        %v1204 = vld [vmem:[#allocation3 + $0x28] sm:$0xff]
        %v1205 = vld [vmem:[#allocation3 + $0x30] sm:$0xff]
        %v1206 = vld [vmem:[#allocation3 + $0x38] sm:$0xff]
        %1213 = vrot.lane.b32.xlu0 %v1201, 112
        %v1214 = vpop.permute.xlu0 %1213
        %1215 = vrot.lane.b32.xlu0 %v1202, 112
        %v1216 = vpop.permute.xlu0 %1215
        %1217 = vrot.lane.b32.xlu0 %v1203, 112
        %v1218 = vpop.permute.xlu0 %1217
        %1219 = vrot.lane.b32.xlu0 %v1204, 112
        %v1220 = vpop.permute.xlu0 %1219
        %1221 = vrot.lane.b32.xlu0 %v1205, 112
        %v1222 = vpop.permute.xlu0 %1221
        %1223 = vrot.lane.b32.xlu0 %v1206, 112
        %v1224 = vpop.permute.xlu0 %1223
        %v1225 = vsel %vm776, %v1214, %v1216
        %v1226 = vsel %vm776, %v1216, %v1218
        %v1227 = vsel %vm776, %v1220, %v1222
        %v1228 = vsel %vm776, %v1222, %v1224
        %v1233 = vsel %vm756, %v1225, 0.0
        %v1234 = vsel %vm757, %v1226, 0.0
        %v1235 = vsel %vm756, %v1227, 0.0
        %v1236 = vsel %vm757, %v1228, 0.0
        %v1237 = vpack.c.bf16 %v1235, %v1233
        %v1238 = vpack.c.bf16 %v1236, %v1234
        %1239 = vst [vmem:[#allocation5 + $0x70] sm:$0xff] %v1237
        %1240 = vst [vmem:[#allocation5 + $0x78] sm:$0xff] %v1238
        %v1241 = vld [vmem:[#allocation3 + $0x8] sm:$0xff]
        %v1242 = vld [vmem:[#allocation3 + $0x10] sm:$0xff]
        %v1243 = vld [vmem:[#allocation3 + $0x18] sm:$0xff]
        %v1244 = vld [vmem:[#allocation3 + $0x28] sm:$0xff]
        %v1245 = vld [vmem:[#allocation3 + $0x30] sm:$0xff]
        %v1246 = vld [vmem:[#allocation3 + $0x38] sm:$0xff]
        %1253 = vrot.lane.b32.xlu0 %v1241, 111
        %v1254 = vpop.permute.xlu0 %1253
        %1255 = vrot.lane.b32.xlu0 %v1242, 111
        %v1256 = vpop.permute.xlu0 %1255
        %1257 = vrot.lane.b32.xlu0 %v1243, 111
        %v1258 = vpop.permute.xlu0 %1257
        %1259 = vrot.lane.b32.xlu0 %v1244, 111
        %v1260 = vpop.permute.xlu0 %1259
        %1261 = vrot.lane.b32.xlu0 %v1245, 111
        %v1262 = vpop.permute.xlu0 %1261
        %1263 = vrot.lane.b32.xlu0 %v1246, 111
        %v1264 = vpop.permute.xlu0 %1263
        %v1265 = vsel %vm821, %v1254, %v1256
        %v1266 = vsel %vm821, %v1256, %v1258
        %v1267 = vsel %vm821, %v1260, %v1262
        %v1268 = vsel %vm821, %v1262, %v1264
        %v1273 = vsel %vm801, %v1265, 0.0
        %v1274 = vsel %vm802, %v1266, 0.0
        %v1275 = vsel %vm801, %v1267, 0.0
        %v1276 = vsel %vm802, %v1268, 0.0
        %v1277 = vpack.c.bf16 %v1275, %v1273
        %v1278 = vpack.c.bf16 %v1276, %v1274
        %1279 = vst [vmem:[#allocation5 + $0x80] sm:$0xff] %v1277
        %1280 = vst [vmem:[#allocation5 + $0x88] sm:$0xff] %v1278
        %v1281 = vpack.c.bf16 %v428, %v426
        %v1282 = vpack.c.bf16 %v429, %v427
        %1283 = vst [vmem:[#allocation5 + $0x90] sm:$0xff] %v1281
        %1284 = vst [vmem:[#allocation5 + $0x98] sm:$0xff] %v1282
        %v1285 = vld [vmem:[#allocation11] sm:$0xff]
        %v1286 = vld [vmem:[#allocation5] sm:$0xff]
        %v1287 = vld [vmem:[#allocation5 + $0x8] sm:$0xff]
        %v1288 = vld [vmem:[#allocation5 + $0x10] sm:$0xff]
        %v1289 = vld [vmem:[#allocation5 + $0x18] sm:$0xff]
        %v1290 = vld [vmem:[#allocation5 + $0x20] sm:$0xff]
        %v1291 = vld [vmem:[#allocation5 + $0x28] sm:$0xff]
        %v1292 = vld [vmem:[#allocation5 + $0x30] sm:$0xff]
        %v1293 = vld [vmem:[#allocation5 + $0x38] sm:$0xff]
        %v1294 = vld [vmem:[#allocation5 + $0x40] sm:$0xff]
        %v1295 = vld [vmem:[#allocation5 + $0x48] sm:$0xff]
        %v1296 = vld [vmem:[#allocation5 + $0x50] sm:$0xff]
        %v1297 = vld [vmem:[#allocation5 + $0x58] sm:$0xff]
        %v1298 = vld [vmem:[#allocation5 + $0x60] sm:$0xff]
        %v1299 = vld [vmem:[#allocation5 + $0x68] sm:$0xff]
        %v1300 = vld [vmem:[#allocation5 + $0x70] sm:$0xff]
        %v1301 = vld [vmem:[#allocation5 + $0x78] sm:$0xff]
        %v1302 = vld [vmem:[#allocation5 + $0x80] sm:$0xff]
        %v1303 = vld [vmem:[#allocation5 + $0x88] sm:$0xff]
        %v1304 = vld [vmem:[#allocation5 + $0x90] sm:$0xff]
        %v1305 = vld [vmem:[#allocation5 + $0x98] sm:$0xff]
        %v1307 = vunpack.c.l.b16 %v1285
        %v1308 = vunpack.c.h.b16 %v1285
        %v1309 = vpack.c.b16 %v1307, %v1307
        %v1310 = vpack.c.b16 %v1308, %v1308
        %vm1312 = vcmask 261120
        %v1314 = vsel %vm1312, %v1310, 0
        %1316 = vmatprep.subr.bf16.mxu0 %v1287
        %1317 = vmatpush1.bf16.msra.mxu0 %v1286
        %1318 = vmatprep.subr.bf16.mxu0 %v1289
        %1319 = vmatpush1.bf16.msra.mxu0 %v1288
        %1320 = vmatprep.subr.bf16.mxu0 %v1291
        %1321 = vmatpush1.bf16.msra.mxu0 %v1290
        %1322 = vmatprep.subr.bf16.mxu0 %v1293
        %1323 = vmatpush1.bf16.msra.mxu0 %v1292
        %1324 = vmatprep.subr.bf16.mxu0 %v1295
        %1325 = vmatpush1.bf16.msra.mxu0 %v1294
        %1326 = vmatprep.subr.bf16.mxu0 %v1297
        %1327 = vmatpush1.bf16.msra.mxu0 %v1296
        %1328 = vmatprep.subr.bf16.mxu0 %v1299
        %1329 = vmatpush1.bf16.msra.mxu0 %v1298
        %1330 = vmatprep.subr.bf16.mxu0 %v1301
        %1331 = vmatpush1.bf16.msra.mxu0 %v1300
        %1332 = vmatprep.subr.bf16.mxu0 %v1303
        %1333 = vmatpush1.bf16.msra.mxu0 %v1302
        %1334 = vmatprep.subr.bf16.mxu0 %v1305
        %1335 = vmatpush1.bf16.msra.mxu0 %v1304
        %1336 = vmatprep.subr.bf16.mxu0 0
        %1337 = vmatpush1.bf16.msra.mxu0 0
        %1338 = vmatprep.subr.bf16.mxu0 0
        %1339 = vmatpush1.bf16.msra.mxu0 0
        %1340 = vmatprep.subr.bf16.mxu0 0
        %1341 = vmatpush1.bf16.msra.mxu0 0
        %1342 = vmatprep.subr.bf16.mxu0 0
        %1343 = vmatpush1.bf16.msra.mxu0 0
        %1344 = vmatprep.subr.bf16.mxu0 0
        %1345 = vmatpush1.bf16.msra.mxu0 0
        %1346 = vmatprep.subr.bf16.mxu0 0
        %1347 = vmatpush1.bf16.msra.mxu0 0
        %1348 = vmatprep.mubr.bf16.mxu0 %v1314
        %1349 = vmatmul.mubr.bf16.gmra.mrb[0].mxu0 %v1309
        %v1350 = vpop.f32.mrb[0].mxu0
        %v1351 = vadd.f32 0.0, %v1350
        %v1352 = vpop.f32.mrb[0].mxu0
        %v1353 = vadd.f32 0.0, %v1352
        %v1354 = vpop.f32.mrb[0].mxu0
        %v1355 = vpop.f32.mrb[0].mxu0
        %1356 = vdwg.mxu0
        %1357 = vst [vmem:[%s381] sm:$0xff] %v1351
        %1358 = vst [vmem:[%s381 + $0x8] sm:$0xff] %v1353
        %s1359 = sand.u32 %s187, 1
        %s1360 = scalar_lea.sflag [#allocation8], %s1359
        %s1361 = sand.u32 %s187, 1
        %s1362 = smul.addr %s1361, 16
        %s1363 = scalar_lea.vmem [#allocation18], %s1362
        // Predicated region
        $region77: #{tpu_custom_call.1} parent=47 // pred_check
          %p1364 = pneg %p197
        $region78: #{tpu_custom_call.1} parent=47 // pred_check_branch
          %1366 = sbr.rel (%p1364) target = $region80
        $region79: #{tpu_custom_call.1} parent=47 // pred_region
          %s1368 = ssub.s32 256, 256
          %1369 = vsyncadd %s1360, %s1368
          %s1370 = smul.addr %s27, 2
          %s1371 = smul.addr %s1370, 128
          %s1372 = scalar_lea.hbm %s7, %s1371
          %s1374 = sshll.u32 %s1363, 4
          %s1375 = int_to_ptr.vmem [resolvable:$true] %s1374
          %1377 = dma.vmem_to_hbm [thread:$0]  %s1375, 256, %s1372, %s1360
        $region80: #{tpu_custom_call.1} parent=47 // pred_fallthru
          _
      $region48: #{tpu_custom_call.1} parent=5 // pred_fallthru
        _
      %p1378 = scmp.le.s32.totalorder 2, %s22
      // Predicated region
      $region81: #{tpu_custom_call.1} parent=5 // pred_check
        %p1379 = pneg %p1378
      $region82: #{tpu_custom_call.1} parent=5 // pred_check_branch
        %1381 = sbr.rel (%p1379) target = $region84
      $region83: #{tpu_custom_call.1} parent=5 // pred_region
        %s1382 = ssub.s32 %s22, 2
        // Predicated region
        $region85: #{tpu_custom_call.1} parent=83 // pred_check
          %p1383 = pneg %p203
        $region86: #{tpu_custom_call.1} parent=83 // pred_check_branch
          %1385 = sbr.rel (%p1383) target = $region88
        $region87: #{tpu_custom_call.1} parent=83 // pred_region
          %s1386 = sand.u32 %s188, 1
          %s1387 = scalar_lea.sflag [#allocation8], %s1386
          %s1388 = sand.u32 %s188, 1
          %s1389 = smul.addr %s1388, 16
          %s1390 = scalar_lea.vmem [#allocation18], %s1389
          %1391 = dma.done %s1387, 256
        $region88: #{tpu_custom_call.1} parent=83 // pred_fallthru
          _
      $region84: #{tpu_custom_call.1} parent=5 // pred_fallthru
        _
    $region6: #{tpu_custom_call.1} parent=1 // loop_footer
      %s26 = sadd.s32 1, %s22
    $region7: #{tpu_custom_call.1} parent=1 // loop_footer_branch
      %21 = sbr.rel target = $region3
    $region8: #{tpu_custom_call.1} parent=1 // loop_exit
      _
    %1392 = vsyncpa [#allocation7], 1
    %s1393 = scalar_lea.sflag [#allocation7], 1
    %1394 = vsyncpa %s1393, 1
    %1395 = vsyncpa [#allocation10], 1
    %1396 = vsyncpa [#allocation13], 1
    %1397 = vsyncpa [#allocation16], 1
    %1398 = vsyncpa [#allocation8], 1
    %s1399 = scalar_lea.sflag [#allocation8], 1
    %1400 = vsyncpa %s1399, 1

</llo_original>
